<compile_context>
chip_gen: v6e
topology: v6e:2x2x1
jax: 0.10.0
libtpu: 0.0.40
codegen_flags: <defaults>
</compile_context>

<pallas_src>
import functools
import math

import numpy as np
import jax
import jax.numpy as jnp
from jax import lax
from jax.experimental import pallas as pl
from jax.experimental.pallas import tpu as pltpu


# ----------------------------- in-kernel helpers -----------------------------

def _gelu_tanh(x):
    # tanh-form GELU: one EUP tanh + a few VPU ops (per-element drift vs the
    # exact erf GELU of torch.nn.GELU() is ~3e-4; asserted end-to-end below).
    c = math.sqrt(2.0 / math.pi)
    return 0.5 * x * (1.0 + jnp.tanh(c * (x + 0.044715 * (x * x * x))))


def _layernorm_t(x, gamma, beta, eps=1e-5):
    # LayerNorm over the channel axis, which is axis 0 in the transposed
    # (channels, points) layout; gamma/beta are (C, 1) columns.  f32 on VPU.
    mu = jnp.mean(x, axis=0, keepdims=True)
    xc = x - mu
    var = jnp.mean(xc * xc, axis=0, keepdims=True)
    return xc * lax.rsqrt(var + eps) * gamma + beta


# --------------------------------- kernel ------------------------------------

def _resmlp_kernel(x_ref, w0_ref, b0_ref, g0_ref, be0_ref,
                   wr_ref, br_ref, gr_ref, ber_ref,
                   wout_ref, bout_ref, out_ref):
    f32 = jnp.float32
    mm_dtype = w0_ref.dtype          # bf16 by default; f32 in the exact path
    x = x_ref[...]                   # (C_in, tile), already in mm_dtype

    # input projection + LN + GELU  (MXU in mm_dtype, f32 accumulate)
    h = jnp.dot(w0_ref[...], x, preferred_element_type=f32) + b0_ref[...]
    h = _gelu_tanh(_layernorm_t(h, g0_ref[...], be0_ref[...]))        # f32

    # residual blocks: h = h + GELU(LN(W h + b)); static unroll over layers
    for l in range(wr_ref.shape[0]):
        r = jnp.dot(wr_ref[l], h.astype(mm_dtype),
                    preferred_element_type=f32) + br_ref[l]
        r = _gelu_tanh(_layernorm_t(r, gr_ref[l], ber_ref[l]))
        h = h + r

    # output projection
    out = jnp.dot(wout_ref[...], h.astype(mm_dtype),
                  preferred_element_type=f32) + bout_ref[...]
    out_ref[...] = out.astype(out_ref.dtype)


# ------------------------- one-time parameter plumbing ------------------------

def prepare_params(p, *, compute_dtype=jnp.bfloat16):
    """Hoisted out of the hot path: transpose weights to (out, in) for the
    (channels, points) layout, reshape biases/LN params to columns, and cast
    matmul operands to the compute dtype (bf16 by default).  Call once."""
    f32 = jnp.float32
    L, H, _ = p["wr"].shape
    f_out = p["wout"].shape[1]
    return {
        "w0_t": p["w0"].astype(compute_dtype).T,                # (H, C_in)
        "b0": p["b0"].astype(f32).reshape(H, 1),
        "g0": p["g0"].astype(f32).reshape(H, 1),
        "be0": p["be0"].astype(f32).reshape(H, 1),
        "wr_t": p["wr"].astype(compute_dtype).transpose(0, 2, 1),  # (L, H, H)
        "br": p["br"].astype(f32).reshape(L, H, 1),
        "gr": p["gr"].astype(f32).reshape(L, H, 1),
        "ber": p["ber"].astype(f32).reshape(L, H, 1),
        "wout_t": p["wout"].astype(compute_dtype).T,            # (C_out, H)
        "bout": p["bout"].astype(f32).reshape(f_out, 1),
    }


# --------------------------------- wrappers -----------------------------------

def resmlp_lane_dense(x_t, prep, *, num_point_tiles=1, core_parallel=False,
                      out_dtype=jnp.float32):
    """Lane-dense entry point: x_t is (C_in, P) with points on lanes; returns
    (C_out, P).  Use this directly to avoid any output transpose."""
    c_in, p_total = x_t.shape
    h_dim = prep["w0_t"].shape[0]
    n_layers = prep["wr_t"].shape[0]
    c_out = prep["wout_t"].shape[0]

    assert p_total % num_point_tiles == 0
    tile = p_total // num_point_tiles
    if num_point_tiles > 1:
        assert tile % 128 == 0, "point tiles must stay lane-aligned (128)"

    const2 = lambda blk: pl.BlockSpec(blk, lambda i: (0, 0))
    const3 = lambda blk: pl.BlockSpec(blk, lambda i: (0, 0, 0))
    in_specs = [
        pl.BlockSpec((c_in, tile), lambda i: (0, i)),       # activations tile
        const2((h_dim, c_in)),                              # w0^T  (constant)
        const2((h_dim, 1)), const2((h_dim, 1)), const2((h_dim, 1)),
        const3((n_layers, h_dim, h_dim)),                   # residual weights
        const3((n_layers, h_dim, 1)), const3((n_layers, h_dim, 1)),
        const3((n_layers, h_dim, 1)),
        const2((c_out, h_dim)), const2((c_out, 1)),         # wout^T, bout
    ]
    out_specs = pl.BlockSpec((c_out, tile), lambda i: (0, i))

    # Advisory cost estimate so XLA schedules neighbors around this cheap call.
    w_bytes = prep["w0_t"].dtype.itemsize
    flops = 2 * p_total * (c_in * h_dim + n_layers * h_dim * h_dim
                           + h_dim * c_out)
    transcendentals = p_total * h_dim * (n_layers + 1)       # tanh per GELU
    bytes_accessed = (p_total * c_in * x_t.dtype.itemsize
                      + (c_in * h_dim + n_layers * h_dim * h_dim
                         + h_dim * c_out) * w_bytes
                      + (n_layers + 1) * 3 * h_dim * 4 + c_out * 4
                      + p_total * c_out * np.dtype(out_dtype).itemsize)

    # CORE_PARALLEL only when explicitly requested (v7x, 2 TCs); otherwise a
    # plain axis — on single-TC v5e/v6e extra tiles are pure per-step overhead.
    dim_sem = (pltpu.CORE_PARALLEL,) if core_parallel else ("arbitrary",)

    return pl.pallas_call(
        _resmlp_kernel,
        out_shape=jax.ShapeDtypeStruct((c_out, p_total), out_dtype),
        grid=(num_point_tiles,),
        in_specs=in_specs,
        out_specs=out_specs,
        compiler_params=pltpu.CompilerParams(dimension_semantics=dim_sem),
        cost_estimate=pl.CostEstimate(flops=int(flops),
                                      transcendentals=int(transcendentals),
                                      bytes_accessed=int(bytes_accessed)),
    )(x_t, prep["w0_t"], prep["b0"], prep["g0"], prep["be0"],
      prep["wr_t"], prep["br"], prep["gr"], prep["ber"],
      prep["wout_t"], prep["bout"])


def resmlp(x, prep, *, num_point_tiles=1, core_parallel=False,
           out_dtype=jnp.float32):
    """Convenience wrapper: x (B, N, C_in) -> (B, N, C_out).  Jit this whole
    function so the layout plumbing fuses with the pallas_call."""
    b, n, c_in = x.shape
    compute_dtype = prep["w0_t"].dtype
    x_t = x.reshape(b * n, c_in).T.astype(compute_dtype)     # (C_in, B*N)
    out_t = resmlp_lane_dense(x_t, prep, num_point_tiles=num_point_tiles,
                              core_parallel=core_parallel, out_dtype=out_dtype)
    return out_t.T.reshape(b, n, -1)


# ----------------------------- plain-JAX reference ----------------------------

def resmlp_ref(x, p, *, approximate_gelu=True, matmul_dtype=jnp.float32):
    md = matmul_dtype
    mm = lambda a, w: jnp.dot(a.astype(md), w.astype(md),
                              preferred_element_type=jnp.float32)

    def ln(v, g, b, eps=1e-5):
        mu = jnp.mean(v, -1, keepdims=True)
        var = jnp.mean((v - mu) ** 2, -1, keepdims=True)
        return (v - mu) / jnp.sqrt(var + eps) * g + b

    gelu = lambda v: jax.nn.gelu(v, approximate=approximate_gelu)
    h = gelu(ln(mm(x, p["w0"]) + p["b0"], p["g0"], p["be0"]))
    for l in range(p["wr"].shape[0]):
        r = gelu(ln(mm(h, p["wr"][l]) + p["br"][l], p["gr"][l], p["ber"][l]))
        h = h + r
    return mm(h, p["wout"]) + p["bout"]


# ----------------------------------- main -------------------------------------

if __name__ == "__main__":
    B, N, C_IN, H, C_OUT, L = 2, 128, 32, 64, 32, 3   # B*N = 256 points

    key = jax.random.PRNGKey(0)
    ks = jax.random.split(key, 8)
    params = {
        "w0": jax.random.normal(ks[0], (C_IN, H), jnp.float32) / math.sqrt(C_IN),
        "b0": jax.random.normal(ks[1], (H,), jnp.float32) * 0.02,
        "g0": jnp.ones((H,), jnp.float32),
        "be0": jnp.zeros((H,), jnp.float32),
        "wr": jax.random.normal(ks[2], (L, H, H), jnp.float32) / math.sqrt(H),
        "br": jax.random.normal(ks[3], (L, H), jnp.float32) * 0.02,
        "gr": jnp.ones((L, H), jnp.float32),
        "ber": jnp.zeros((L, H), jnp.float32),
        "wout": jax.random.normal(ks[4], (H, C_OUT), jnp.float32) / math.sqrt(H),
        "bout": jax.random.normal(ks[5], (C_OUT,), jnp.float32) * 0.02,
    }
    x = jax.random.normal(ks[6], (B, N, C_IN), jnp.float32)

    # one-time parameter plumbing (hoisted out of the hot path)
    prep_bf16 = prepare_params(params, compute_dtype=jnp.bfloat16)
    prep_f32 = prepare_params(params, compute_dtype=jnp.float32)

    # default: bf16 matmul operands, one big 256-lane block (single-TC chips)
    run1 = jax.jit(functools.partial(resmlp, num_point_tiles=1))
    out_bf16 = jax.block_until_ready(run1(x, prep_bf16))

    # two point tiles must be numerically identical (pure tiling change);
    # on v7x pass core_parallel=True to spread the two tiles over both TCs.
    run2 = jax.jit(functools.partial(resmlp, num_point_tiles=2))
    out_bf16_t2 = jax.block_until_ready(run2(x, prep_bf16))
    tile_err = float(jnp.max(jnp.abs(out_bf16 - out_bf16_t2)))
    assert tile_err < 1e-5, f"tiled/untiled mismatch: {tile_err}"

    # exact-precision path for a tight semantics check
    out_f32 = jax.block_until_ready(run1(x, prep_f32))

    ref_bf16 = resmlp_ref(x, params, approximate_gelu=True,
                          matmul_dtype=jnp.bfloat16)
    ref_f32 = resmlp_ref(x, params, approximate_gelu=True,
                         matmul_dtype=jnp.float32)
    ref_exact = resmlp_ref(x, params, approximate_gelu=False,
                           matmul_dtype=jnp.float32)   # torch nn.GELU semantics

    err_bf16 = float(jnp.max(jnp.abs(out_bf16 - ref_bf16)))
    err_f32 = float(jnp.max(jnp.abs(out_f32 - ref_f32)))
    err_exact = float(jnp.max(jnp.abs(out_f32 - ref_exact)))
    assert err_bf16 < 5e-3, f"bf16 kernel vs bf16 reference: {err_bf16}"
    assert err_f32 < 1e-4, f"f32 kernel vs f32 reference: {err_f32}"
    assert err_exact < 2e-2, f"f32 kernel vs exact-erf-GELU reference: {err_exact}"

    print("KERNEL_OK")
</pallas_src>

<mosaic_0001>
module attributes {stable_mosaic.version = 11 : i64} {
  func.func @_resmlp_kernel(%arg0: i32, %arg1: memref<32x256xbf16, #tpu.memory_space<vmem>>, %arg2: memref<64x32xbf16, #tpu.memory_space<vmem>>, %arg3: memref<64x1xf32, #tpu.memory_space<vmem>>, %arg4: memref<64x1xf32, #tpu.memory_space<vmem>>, %arg5: memref<64x1xf32, #tpu.memory_space<vmem>>, %arg6: memref<3x64x64xbf16, #tpu.memory_space<vmem>>, %arg7: memref<3x64x1xf32, #tpu.memory_space<vmem>>, %arg8: memref<3x64x1xf32, #tpu.memory_space<vmem>>, %arg9: memref<3x64x1xf32, #tpu.memory_space<vmem>>, %arg10: memref<32x64xbf16, #tpu.memory_space<vmem>>, %arg11: memref<32x1xf32, #tpu.memory_space<vmem>>, %arg12: memref<32x256xf32, #tpu.memory_space<vmem>>) attributes {dimension_semantics = [#tpu.dimension_semantics<arbitrary>], iteration_bounds = array<i64: 1>, scalar_prefetch = 0 : i64, scratch_operands = 0 : i64, tpu.core_type = #tpu.core_type<tc>, window_params = [{transform_indices = @transform_0, window_bounds = array<i64: 32, 256>}, {pipeline_mode = #tpu.pipeline_mode<synchronous>, transform_indices = @transform_1, window_bounds = array<i64: 64, 32>}, {pipeline_mode = #tpu.pipeline_mode<synchronous>, transform_indices = @transform_2, window_bounds = array<i64: 64, 1>}, {pipeline_mode = #tpu.pipeline_mode<synchronous>, transform_indices = @transform_3, window_bounds = array<i64: 64, 1>}, {pipeline_mode = #tpu.pipeline_mode<synchronous>, transform_indices = @transform_4, window_bounds = array<i64: 64, 1>}, {pipeline_mode = #tpu.pipeline_mode<synchronous>, transform_indices = @transform_5, window_bounds = array<i64: 3, 64, 64>}, {pipeline_mode = #tpu.pipeline_mode<synchronous>, transform_indices = @transform_6, window_bounds = array<i64: 3, 64, 1>}, {pipeline_mode = #tpu.pipeline_mode<synchronous>, transform_indices = @transform_7, window_bounds = array<i64: 3, 64, 1>}, {pipeline_mode = #tpu.pipeline_mode<synchronous>, transform_indices = @transform_8, window_bounds = array<i64: 3, 64, 1>}, {pipeline_mode = #tpu.pipeline_mode<synchronous>, transform_indices = @transform_9, window_bounds = array<i64: 32, 64>}, {pipeline_mode = #tpu.pipeline_mode<synchronous>, transform_indices = @transform_10, window_bounds = array<i64: 32, 1>}, {transform_indices = @transform_11, window_bounds = array<i64: 32, 256>}]} {
    %c0 = arith.constant 0 : index
    %c0_0 = arith.constant 0 : index
    %0 = vector.load %arg1[%c0, %c0_0] : memref<32x256xbf16, #tpu.memory_space<vmem>>, vector<32x256xbf16>
    %c0_1 = arith.constant 0 : index
    %c0_2 = arith.constant 0 : index
    %1 = vector.load %arg2[%c0_1, %c0_2] : memref<64x32xbf16, #tpu.memory_space<vmem>>, vector<64x32xbf16>
    %cst = arith.constant dense<0.000000e+00> : vector<64x256xf32>
    %2 = tpu.matmul %1, %0, %cst {dimension_numbers = #tpu.dot_dimension_numbers<[1], [0], [0], [1], [0, 0, 1, 1], [], []>} : vector<64x32xbf16>, vector<32x256xbf16>, vector<64x256xf32> -> vector<64x256xf32>
    %c0_3 = arith.constant 0 : index
    %c0_4 = arith.constant 0 : index
    %3 = vector.load %arg3[%c0_3, %c0_4] : memref<64x1xf32, #tpu.memory_space<vmem>>, vector<64x1xf32>
    %4 = vector.broadcast %3 : vector<64x1xf32> to vector<64x256xf32>
    %5 = arith.addf %2, %4 : vector<64x256xf32>
    %c0_5 = arith.constant 0 : index
    %c0_6 = arith.constant 0 : index
    %6 = vector.load %arg4[%c0_5, %c0_6] : memref<64x1xf32, #tpu.memory_space<vmem>>, vector<64x1xf32>
    %c0_7 = arith.constant 0 : index
    %c0_8 = arith.constant 0 : index
    %7 = vector.load %arg5[%c0_7, %c0_8] : memref<64x1xf32, #tpu.memory_space<vmem>>, vector<64x1xf32>
    %cst_9 = arith.constant dense<0.000000e+00> : vector<256xf32>
    %8 = vector.multi_reduction <add>, %5, %cst_9 [0] : vector<64x256xf32> to vector<256xf32>
    %9 = vector.shape_cast %8 : vector<256xf32> to vector<1x256xf32>
    %cst_10 = arith.constant 6.400000e+01 : f32
    %10 = vector.broadcast %cst_10 : f32 to vector<1x256xf32>
    %11 = arith.divf %9, %10 : vector<1x256xf32>
    %12 = vector.broadcast %11 : vector<1x256xf32> to vector<64x256xf32>
    %13 = arith.subf %5, %12 : vector<64x256xf32>
    %14 = arith.mulf %13, %13 : vector<64x256xf32>
    %cst_11 = arith.constant dense<0.000000e+00> : vector<256xf32>
    %15 = vector.multi_reduction <add>, %14, %cst_11 [0] : vector<64x256xf32> to vector<256xf32>
    %16 = vector.shape_cast %15 : vector<256xf32> to vector<1x256xf32>
    %cst_12 = arith.constant 6.400000e+01 : f32
    %17 = vector.broadcast %cst_12 : f32 to vector<1x256xf32>
    %18 = arith.divf %16, %17 : vector<1x256xf32>
    %cst_13 = arith.constant 9.99999974E-6 : f32
    %19 = vector.broadcast %cst_13 : f32 to vector<1x256xf32>
    %20 = arith.addf %18, %19 : vector<1x256xf32>
    %21 = math.rsqrt %20 : vector<1x256xf32>
    %22 = vector.broadcast %21 : vector<1x256xf32> to vector<64x256xf32>
    %23 = arith.mulf %13, %22 : vector<64x256xf32>
    %24 = vector.broadcast %6 : vector<64x1xf32> to vector<64x256xf32>
    %25 = arith.mulf %23, %24 : vector<64x256xf32>
    %26 = vector.broadcast %7 : vector<64x1xf32> to vector<64x256xf32>
    %27 = arith.addf %25, %26 : vector<64x256xf32>
    %cst_14 = arith.constant 5.000000e-01 : f32
    %28 = vector.broadcast %cst_14 : f32 to vector<64x256xf32>
    %29 = arith.mulf %28, %27 : vector<64x256xf32>
    %30 = arith.mulf %27, %27 : vector<64x256xf32>
    %31 = arith.mulf %30, %27 : vector<64x256xf32>
    %cst_15 = arith.constant 4.471500e-02 : f32
    %32 = vector.broadcast %cst_15 : f32 to vector<64x256xf32>
    %33 = arith.mulf %32, %31 : vector<64x256xf32>
    %34 = arith.addf %27, %33 : vector<64x256xf32>
    %cst_16 = arith.constant 0.797884583 : f32
    %35 = vector.broadcast %cst_16 : f32 to vector<64x256xf32>
    %36 = arith.mulf %35, %34 : vector<64x256xf32>
    %37 = math.tanh %36 : vector<64x256xf32>
    %cst_17 = arith.constant 1.000000e+00 : f32
    %38 = vector.broadcast %cst_17 : f32 to vector<64x256xf32>
    %39 = arith.addf %38, %37 : vector<64x256xf32>
    %40 = arith.mulf %29, %39 : vector<64x256xf32>
    %c0_18 = arith.constant 0 : index
    %c0_19 = arith.constant 0 : index
    %c0_20 = arith.constant 0 : index
    %41 = vector.load %arg6[%c0_18, %c0_19, %c0_20] : memref<3x64x64xbf16, #tpu.memory_space<vmem>>, vector<1x64x64xbf16>
    %42 = vector.shape_cast %41 : vector<1x64x64xbf16> to vector<64x64xbf16>
    %43 = arith.truncf %40 : vector<64x256xf32> to vector<64x256xbf16>
    %cst_21 = arith.constant dense<0.000000e+00> : vector<64x256xf32>
    %44 = tpu.matmul %42, %43, %cst_21 {dimension_numbers = #tpu.dot_dimension_numbers<[1], [0], [0], [1], [0, 0, 1, 1], [], []>} : vector<64x64xbf16>, vector<64x256xbf16>, vector<64x256xf32> -> vector<64x256xf32>
    %c0_22 = arith.constant 0 : index
    %c0_23 = arith.constant 0 : index
    %c0_24 = arith.constant 0 : index
    %45 = vector.load %arg7[%c0_22, %c0_23, %c0_24] : memref<3x64x1xf32, #tpu.memory_space<vmem>>, vector<1x64x1xf32>
    %46 = vector.shape_cast %45 : vector<1x64x1xf32> to vector<64x1xf32>
    %47 = vector.broadcast %46 : vector<64x1xf32> to vector<64x256xf32>
    %48 = arith.addf %44, %47 : vector<64x256xf32>
    %c0_25 = arith.constant 0 : index
    %c0_26 = arith.constant 0 : index
    %c0_27 = arith.constant 0 : index
    %49 = vector.load %arg8[%c0_25, %c0_26, %c0_27] : memref<3x64x1xf32, #tpu.memory_space<vmem>>, vector<1x64x1xf32>
    %50 = vector.shape_cast %49 : vector<1x64x1xf32> to vector<64x1xf32>
    %c0_28 = arith.constant 0 : index
    %c0_29 = arith.constant 0 : index
    %c0_30 = arith.constant 0 : index
    %51 = vector.load %arg9[%c0_28, %c0_29, %c0_30] : memref<3x64x1xf32, #tpu.memory_space<vmem>>, vector<1x64x1xf32>
    %52 = vector.shape_cast %51 : vector<1x64x1xf32> to vector<64x1xf32>
    %cst_31 = arith.constant dense<0.000000e+00> : vector<256xf32>
    %53 = vector.multi_reduction <add>, %48, %cst_31 [0] : vector<64x256xf32> to vector<256xf32>
    %54 = vector.shape_cast %53 : vector<256xf32> to vector<1x256xf32>
    %cst_32 = arith.constant 6.400000e+01 : f32
    %55 = vector.broadcast %cst_32 : f32 to vector<1x256xf32>
    %56 = arith.divf %54, %55 : vector<1x256xf32>
    %57 = vector.broadcast %56 : vector<1x256xf32> to vector<64x256xf32>
    %58 = arith.subf %48, %57 : vector<64x256xf32>
    %59 = arith.mulf %58, %58 : vector<64x256xf32>
    %cst_33 = arith.constant dense<0.000000e+00> : vector<256xf32>
    %60 = vector.multi_reduction <add>, %59, %cst_33 [0] : vector<64x256xf32> to vector<256xf32>
    %61 = vector.shape_cast %60 : vector<256xf32> to vector<1x256xf32>
    %cst_34 = arith.constant 6.400000e+01 : f32
    %62 = vector.broadcast %cst_34 : f32 to vector<1x256xf32>
    %63 = arith.divf %61, %62 : vector<1x256xf32>
    %cst_35 = arith.constant 9.99999974E-6 : f32
    %64 = vector.broadcast %cst_35 : f32 to vector<1x256xf32>
    %65 = arith.addf %63, %64 : vector<1x256xf32>
    %66 = math.rsqrt %65 : vector<1x256xf32>
    %67 = vector.broadcast %66 : vector<1x256xf32> to vector<64x256xf32>
    %68 = arith.mulf %58, %67 : vector<64x256xf32>
    %69 = vector.broadcast %50 : vector<64x1xf32> to vector<64x256xf32>
    %70 = arith.mulf %68, %69 : vector<64x256xf32>
    %71 = vector.broadcast %52 : vector<64x1xf32> to vector<64x256xf32>
    %72 = arith.addf %70, %71 : vector<64x256xf32>
    %cst_36 = arith.constant 5.000000e-01 : f32
    %73 = vector.broadcast %cst_36 : f32 to vector<64x256xf32>
    %74 = arith.mulf %73, %72 : vector<64x256xf32>
    %75 = arith.mulf %72, %72 : vector<64x256xf32>
    %76 = arith.mulf %75, %72 : vector<64x256xf32>
    %cst_37 = arith.constant 4.471500e-02 : f32
    %77 = vector.broadcast %cst_37 : f32 to vector<64x256xf32>
    %78 = arith.mulf %77, %76 : vector<64x256xf32>
    %79 = arith.addf %72, %78 : vector<64x256xf32>
    %cst_38 = arith.constant 0.797884583 : f32
    %80 = vector.broadcast %cst_38 : f32 to vector<64x256xf32>
    %81 = arith.mulf %80, %79 : vector<64x256xf32>
    %82 = math.tanh %81 : vector<64x256xf32>
    %cst_39 = arith.constant 1.000000e+00 : f32
    %83 = vector.broadcast %cst_39 : f32 to vector<64x256xf32>
    %84 = arith.addf %83, %82 : vector<64x256xf32>
    %85 = arith.mulf %74, %84 : vector<64x256xf32>
    %86 = arith.addf %40, %85 : vector<64x256xf32>
    %c1 = arith.constant 1 : index
    %c0_40 = arith.constant 0 : index
    %c0_41 = arith.constant 0 : index
    %87 = vector.load %arg6[%c1, %c0_40, %c0_41] : memref<3x64x64xbf16, #tpu.memory_space<vmem>>, vector<1x64x64xbf16>
    %88 = vector.shape_cast %87 : vector<1x64x64xbf16> to vector<64x64xbf16>
    %89 = arith.truncf %86 : vector<64x256xf32> to vector<64x256xbf16>
    %cst_42 = arith.constant dense<0.000000e+00> : vector<64x256xf32>
    %90 = tpu.matmul %88, %89, %cst_42 {dimension_numbers = #tpu.dot_dimension_numbers<[1], [0], [0], [1], [0, 0, 1, 1], [], []>} : vector<64x64xbf16>, vector<64x256xbf16>, vector<64x256xf32> -> vector<64x256xf32>
    %c1_43 = arith.constant 1 : index
    %c0_44 = arith.constant 0 : index
    %c0_45 = arith.constant 0 : index
    %91 = vector.load %arg7[%c1_43, %c0_44, %c0_45] : memref<3x64x1xf32, #tpu.memory_space<vmem>>, vector<1x64x1xf32>
    %92 = vector.shape_cast %91 : vector<1x64x1xf32> to vector<64x1xf32>
    %93 = vector.broadcast %92 : vector<64x1xf32> to vector<64x256xf32>
    %94 = arith.addf %90, %93 : vector<64x256xf32>
    %c1_46 = arith.constant 1 : index
    %c0_47 = arith.constant 0 : index
    %c0_48 = arith.constant 0 : index
    %95 = vector.load %arg8[%c1_46, %c0_47, %c0_48] : memref<3x64x1xf32, #tpu.memory_space<vmem>>, vector<1x64x1xf32>
    %96 = vector.shape_cast %95 : vector<1x64x1xf32> to vector<64x1xf32>
    %c1_49 = arith.constant 1 : index
    %c0_50 = arith.constant 0 : index
    %c0_51 = arith.constant 0 : index
    %97 = vector.load %arg9[%c1_49, %c0_50, %c0_51] : memref<3x64x1xf32, #tpu.memory_space<vmem>>, vector<1x64x1xf32>
    %98 = vector.shape_cast %97 : vector<1x64x1xf32> to vector<64x1xf32>
    %cst_52 = arith.constant dense<0.000000e+00> : vector<256xf32>
    %99 = vector.multi_reduction <add>, %94, %cst_52 [0] : vector<64x256xf32> to vector<256xf32>
    %100 = vector.shape_cast %99 : vector<256xf32> to vector<1x256xf32>
    %cst_53 = arith.constant 6.400000e+01 : f32
    %101 = vector.broadcast %cst_53 : f32 to vector<1x256xf32>
    %102 = arith.divf %100, %101 : vector<1x256xf32>
    %103 = vector.broadcast %102 : vector<1x256xf32> to vector<64x256xf32>
    %104 = arith.subf %94, %103 : vector<64x256xf32>
    %105 = arith.mulf %104, %104 : vector<64x256xf32>
    %cst_54 = arith.constant dense<0.000000e+00> : vector<256xf32>
    %106 = vector.multi_reduction <add>, %105, %cst_54 [0] : vector<64x256xf32> to vector<256xf32>
    %107 = vector.shape_cast %106 : vector<256xf32> to vector<1x256xf32>
    %cst_55 = arith.constant 6.400000e+01 : f32
    %108 = vector.broadcast %cst_55 : f32 to vector<1x256xf32>
    %109 = arith.divf %107, %108 : vector<1x256xf32>
    %cst_56 = arith.constant 9.99999974E-6 : f32
    %110 = vector.broadcast %cst_56 : f32 to vector<1x256xf32>
    %111 = arith.addf %109, %110 : vector<1x256xf32>
    %112 = math.rsqrt %111 : vector<1x256xf32>
    %113 = vector.broadcast %112 : vector<1x256xf32> to vector<64x256xf32>
    %114 = arith.mulf %104, %113 : vector<64x256xf32>
    %115 = vector.broadcast %96 : vector<64x1xf32> to vector<64x256xf32>
    %116 = arith.mulf %114, %115 : vector<64x256xf32>
    %117 = vector.broadcast %98 : vector<64x1xf32> to vector<64x256xf32>
    %118 = arith.addf %116, %117 : vector<64x256xf32>
    %cst_57 = arith.constant 5.000000e-01 : f32
    %119 = vector.broadcast %cst_57 : f32 to vector<64x256xf32>
    %120 = arith.mulf %119, %118 : vector<64x256xf32>
    %121 = arith.mulf %118, %118 : vector<64x256xf32>
    %122 = arith.mulf %121, %118 : vector<64x256xf32>
    %cst_58 = arith.constant 4.471500e-02 : f32
    %123 = vector.broadcast %cst_58 : f32 to vector<64x256xf32>
    %124 = arith.mulf %123, %122 : vector<64x256xf32>
    %125 = arith.addf %118, %124 : vector<64x256xf32>
    %cst_59 = arith.constant 0.797884583 : f32
    %126 = vector.broadcast %cst_59 : f32 to vector<64x256xf32>
    %127 = arith.mulf %126, %125 : vector<64x256xf32>
    %128 = math.tanh %127 : vector<64x256xf32>
    %cst_60 = arith.constant 1.000000e+00 : f32
    %129 = vector.broadcast %cst_60 : f32 to vector<64x256xf32>
    %130 = arith.addf %129, %128 : vector<64x256xf32>
    %131 = arith.mulf %120, %130 : vector<64x256xf32>
    %132 = arith.addf %86, %131 : vector<64x256xf32>
    %c2 = arith.constant 2 : index
    %c0_61 = arith.constant 0 : index
    %c0_62 = arith.constant 0 : index
    %133 = vector.load %arg6[%c2, %c0_61, %c0_62] : memref<3x64x64xbf16, #tpu.memory_space<vmem>>, vector<1x64x64xbf16>
    %134 = vector.shape_cast %133 : vector<1x64x64xbf16> to vector<64x64xbf16>
    %135 = arith.truncf %132 : vector<64x256xf32> to vector<64x256xbf16>
    %cst_63 = arith.constant dense<0.000000e+00> : vector<64x256xf32>
    %136 = tpu.matmul %134, %135, %cst_63 {dimension_numbers = #tpu.dot_dimension_numbers<[1], [0], [0], [1], [0, 0, 1, 1], [], []>} : vector<64x64xbf16>, vector<64x256xbf16>, vector<64x256xf32> -> vector<64x256xf32>
    %c2_64 = arith.constant 2 : index
    %c0_65 = arith.constant 0 : index
    %c0_66 = arith.constant 0 : index
    %137 = vector.load %arg7[%c2_64, %c0_65, %c0_66] : memref<3x64x1xf32, #tpu.memory_space<vmem>>, vector<1x64x1xf32>
    %138 = vector.shape_cast %137 : vector<1x64x1xf32> to vector<64x1xf32>
    %139 = vector.broadcast %138 : vector<64x1xf32> to vector<64x256xf32>
    %140 = arith.addf %136, %139 : vector<64x256xf32>
    %c2_67 = arith.constant 2 : index
    %c0_68 = arith.constant 0 : index
    %c0_69 = arith.constant 0 : index
    %141 = vector.load %arg8[%c2_67, %c0_68, %c0_69] : memref<3x64x1xf32, #tpu.memory_space<vmem>>, vector<1x64x1xf32>
    %142 = vector.shape_cast %141 : vector<1x64x1xf32> to vector<64x1xf32>
    %c2_70 = arith.constant 2 : index
    %c0_71 = arith.constant 0 : index
    %c0_72 = arith.constant 0 : index
    %143 = vector.load %arg9[%c2_70, %c0_71, %c0_72] : memref<3x64x1xf32, #tpu.memory_space<vmem>>, vector<1x64x1xf32>
    %144 = vector.shape_cast %143 : vector<1x64x1xf32> to vector<64x1xf32>
    %cst_73 = arith.constant dense<0.000000e+00> : vector<256xf32>
    %145 = vector.multi_reduction <add>, %140, %cst_73 [0] : vector<64x256xf32> to vector<256xf32>
    %146 = vector.shape_cast %145 : vector<256xf32> to vector<1x256xf32>
    %cst_74 = arith.constant 6.400000e+01 : f32
    %147 = vector.broadcast %cst_74 : f32 to vector<1x256xf32>
    %148 = arith.divf %146, %147 : vector<1x256xf32>
    %149 = vector.broadcast %148 : vector<1x256xf32> to vector<64x256xf32>
    %150 = arith.subf %140, %149 : vector<64x256xf32>
    %151 = arith.mulf %150, %150 : vector<64x256xf32>
    %cst_75 = arith.constant dense<0.000000e+00> : vector<256xf32>
    %152 = vector.multi_reduction <add>, %151, %cst_75 [0] : vector<64x256xf32> to vector<256xf32>
    %153 = vector.shape_cast %152 : vector<256xf32> to vector<1x256xf32>
    %cst_76 = arith.constant 6.400000e+01 : f32
    %154 = vector.broadcast %cst_76 : f32 to vector<1x256xf32>
    %155 = arith.divf %153, %154 : vector<1x256xf32>
    %cst_77 = arith.constant 9.99999974E-6 : f32
    %156 = vector.broadcast %cst_77 : f32 to vector<1x256xf32>
    %157 = arith.addf %155, %156 : vector<1x256xf32>
    %158 = math.rsqrt %157 : vector<1x256xf32>
    %159 = vector.broadcast %158 : vector<1x256xf32> to vector<64x256xf32>
    %160 = arith.mulf %150, %159 : vector<64x256xf32>
    %161 = vector.broadcast %142 : vector<64x1xf32> to vector<64x256xf32>
    %162 = arith.mulf %160, %161 : vector<64x256xf32>
    %163 = vector.broadcast %144 : vector<64x1xf32> to vector<64x256xf32>
    %164 = arith.addf %162, %163 : vector<64x256xf32>
    %cst_78 = arith.constant 5.000000e-01 : f32
    %165 = vector.broadcast %cst_78 : f32 to vector<64x256xf32>
    %166 = arith.mulf %165, %164 : vector<64x256xf32>
    %167 = arith.mulf %164, %164 : vector<64x256xf32>
    %168 = arith.mulf %167, %164 : vector<64x256xf32>
    %cst_79 = arith.constant 4.471500e-02 : f32
    %169 = vector.broadcast %cst_79 : f32 to vector<64x256xf32>
    %170 = arith.mulf %169, %168 : vector<64x256xf32>
    %171 = arith.addf %164, %170 : vector<64x256xf32>
    %cst_80 = arith.constant 0.797884583 : f32
    %172 = vector.broadcast %cst_80 : f32 to vector<64x256xf32>
    %173 = arith.mulf %172, %171 : vector<64x256xf32>
    %174 = math.tanh %173 : vector<64x256xf32>
    %cst_81 = arith.constant 1.000000e+00 : f32
    %175 = vector.broadcast %cst_81 : f32 to vector<64x256xf32>
    %176 = arith.addf %175, %174 : vector<64x256xf32>
    %177 = arith.mulf %166, %176 : vector<64x256xf32>
    %178 = arith.addf %132, %177 : vector<64x256xf32>
    %c0_82 = arith.constant 0 : index
    %c0_83 = arith.constant 0 : index
    %179 = vector.load %arg10[%c0_82, %c0_83] : memref<32x64xbf16, #tpu.memory_space<vmem>>, vector<32x64xbf16>
    %180 = arith.truncf %178 : vector<64x256xf32> to vector<64x256xbf16>
    %cst_84 = arith.constant dense<0.000000e+00> : vector<32x256xf32>
    %181 = tpu.matmul %179, %180, %cst_84 {dimension_numbers = #tpu.dot_dimension_numbers<[1], [0], [0], [1], [0, 0, 1, 1], [], []>} : vector<32x64xbf16>, vector<64x256xbf16>, vector<32x256xf32> -> vector<32x256xf32>
    %c0_85 = arith.constant 0 : index
    %c0_86 = arith.constant 0 : index
    %182 = vector.load %arg11[%c0_85, %c0_86] : memref<32x1xf32, #tpu.memory_space<vmem>>, vector<32x1xf32>
    %183 = vector.broadcast %182 : vector<32x1xf32> to vector<32x256xf32>
    %184 = arith.addf %181, %183 : vector<32x256xf32>
    %c0_87 = arith.constant 0 : index
    %c0_88 = arith.constant 0 : index
    %185 = vector.load %arg12[%c0_87, %c0_88] : memref<32x256xf32, #tpu.memory_space<vmem>>, vector<32x256xf32>
    tpu.vector_store %arg12[%c0_87, %c0_88], %184 {strides = array<i32>} : memref<32x256xf32, #tpu.memory_space<vmem>>, vector<32x256xf32>,
    return
  }
  func.func @transform_0(%arg0: i32) -> (i32, i32) {
    %c0_i32 = arith.constant 0 : i32
    %c0_i32_0 = arith.constant 0 : i32
    return %c0_i32, %arg0 : i32, i32
  }
  func.func @transform_1(%arg0: i32) -> (i32, i32) {
    %c0_i32 = arith.constant 0 : i32
    %c0_i32_0 = arith.constant 0 : i32
    %c0_i32_1 = arith.constant 0 : i32
    return %c0_i32, %c0_i32_0 : i32, i32
  }
  func.func @transform_2(%arg0: i32) -> (i32, i32) {
    %c0_i32 = arith.constant 0 : i32
    %c0_i32_0 = arith.constant 0 : i32
    %c0_i32_1 = arith.constant 0 : i32
    return %c0_i32, %c0_i32_0 : i32, i32
  }
  func.func @transform_3(%arg0: i32) -> (i32, i32) {
    %c0_i32 = arith.constant 0 : i32
    %c0_i32_0 = arith.constant 0 : i32
    %c0_i32_1 = arith.constant 0 : i32
    return %c0_i32, %c0_i32_0 : i32, i32
  }
  func.func @transform_4(%arg0: i32) -> (i32, i32) {
    %c0_i32 = arith.constant 0 : i32
    %c0_i32_0 = arith.constant 0 : i32
    %c0_i32_1 = arith.constant 0 : i32
    return %c0_i32, %c0_i32_0 : i32, i32
  }
  func.func @transform_5(%arg0: i32) -> (i32, i32, i32) {
    %c0_i32 = arith.constant 0 : i32
    %c0_i32_0 = arith.constant 0 : i32
    %c0_i32_1 = arith.constant 0 : i32
    %c0_i32_2 = arith.constant 0 : i32
    return %c0_i32, %c0_i32_0, %c0_i32_1 : i32, i32, i32
  }
  func.func @transform_6(%arg0: i32) -> (i32, i32, i32) {
    %c0_i32 = arith.constant 0 : i32
    %c0_i32_0 = arith.constant 0 : i32
    %c0_i32_1 = arith.constant 0 : i32
    %c0_i32_2 = arith.constant 0 : i32
    return %c0_i32, %c0_i32_0, %c0_i32_1 : i32, i32, i32
  }
  func.func @transform_7(%arg0: i32) -> (i32, i32, i32) {
    %c0_i32 = arith.constant 0 : i32
    %c0_i32_0 = arith.constant 0 : i32
    %c0_i32_1 = arith.constant 0 : i32
    %c0_i32_2 = arith.constant 0 : i32
    return %c0_i32, %c0_i32_0, %c0_i32_1 : i32, i32, i32
  }
  func.func @transform_8(%arg0: i32) -> (i32, i32, i32) {
    %c0_i32 = arith.constant 0 : i32
    %c0_i32_0 = arith.constant 0 : i32
    %c0_i32_1 = arith.constant 0 : i32
    %c0_i32_2 = arith.constant 0 : i32
    return %c0_i32, %c0_i32_0, %c0_i32_1 : i32, i32, i32
  }
  func.func @transform_9(%arg0: i32) -> (i32, i32) {
    %c0_i32 = arith.constant 0 : i32
    %c0_i32_0 = arith.constant 0 : i32
    %c0_i32_1 = arith.constant 0 : i32
    return %c0_i32, %c0_i32_0 : i32, i32
  }
  func.func @transform_10(%arg0: i32) -> (i32, i32) {
    %c0_i32 = arith.constant 0 : i32
    %c0_i32_0 = arith.constant 0 : i32
    %c0_i32_1 = arith.constant 0 : i32
    return %c0_i32, %c0_i32_0 : i32, i32
  }
  func.func @transform_11(%arg0: i32) -> (i32, i32) {
    %c0_i32 = arith.constant 0 : i32
    %c0_i32_0 = arith.constant 0 : i32
    return %c0_i32, %arg0 : i32, i32
  }
}

</mosaic_0001>

<llo_original>
// kernel: resmlp.1
$region0: #{resmlp.1}
  #allocation0 [shape = 'u32[]', space=smem, size = 0x4, offset = 0x4, fixed_abs, tag = 'smem constant byte address 0x4 - core index']
  #allocation1 [shape = 'u32[144,128]{1,0:T(1,128)}', space=vmem, size = 0x12000, scoped, tag = 'internal scratch']
  %s0 = inlined_call_operand.vmem [shape: bf16[32,256], index: 0, kind: input, shape index: {}]
  %s1 = inlined_call_operand.vmem [shape: bf16[64,32], index: 1, kind: input, shape index: {}]
  %s2 = inlined_call_operand.vmem [shape: f32[64,1], index: 2, kind: input, shape index: {}]
  %s3 = inlined_call_operand.vmem [shape: f32[64,1], index: 3, kind: input, shape index: {}]
  %s4 = inlined_call_operand.vmem [shape: f32[64,1], index: 4, kind: input, shape index: {}]
  %s5 = inlined_call_operand.vmem [shape: bf16[3,64,64], index: 5, kind: input, shape index: {}]
  %s6 = inlined_call_operand.vmem [shape: f32[3,64,1], index: 6, kind: input, shape index: {}]
  %s7 = inlined_call_operand.vmem [shape: f32[3,64,1], index: 7, kind: input, shape index: {}]
  %s8 = inlined_call_operand.vmem [shape: f32[3,64,1], index: 8, kind: input, shape index: {}]
  %s9 = inlined_call_operand.vmem [shape: bf16[32,64], index: 9, kind: input, shape index: {}]
  %s10 = inlined_call_operand.vmem [shape: f32[32,1], index: 10, kind: input, shape index: {}]
  %s11 = inlined_call_operand.vmem [shape: f32[32,256], index: 11, kind: output, shape index: {}]
  %s12 = sld [smem:[#allocation0]]
  $region54: #{resmlp.1} parent=0
    _
  %s14 = ssub.s32 1, %s12
  %s15 = scalar_select 0, %s14, %s12
  // Predicated region
  $region2: #{resmlp.1} parent=0 // pred_check
    _
  $region3: #{resmlp.1} parent=0 // pred_check_branch
    %17 = sbr.rel (0) target = $region5
  $region4: #{resmlp.1} parent=0 // pred_region
    _
  $region5: #{resmlp.1} parent=0 // pred_fallthru
    _
  // Predicated region
  $region6: #{resmlp.1} parent=0 // pred_check
    _
  $region7: #{resmlp.1} parent=0 // pred_check_branch
    %19 = sbr.rel (0) target = $region9
  $region8: #{resmlp.1} parent=0 // pred_region
    _
  $region9: #{resmlp.1} parent=0 // pred_fallthru
    _
  // Predicated region
  $region10: #{resmlp.1} parent=0 // pred_check
    _
  $region11: #{resmlp.1} parent=0 // pred_check_branch
    %21 = sbr.rel (0) target = $region13
  $region12: #{resmlp.1} parent=0 // pred_region
    _
  $region13: #{resmlp.1} parent=0 // pred_fallthru
    _
  // Predicated region
  $region14: #{resmlp.1} parent=0 // pred_check
    _
  $region15: #{resmlp.1} parent=0 // pred_check_branch
    %23 = sbr.rel (0) target = $region17
  $region16: #{resmlp.1} parent=0 // pred_region
    _
  $region17: #{resmlp.1} parent=0 // pred_fallthru
    _
  // Predicated region
  $region18: #{resmlp.1} parent=0 // pred_check
    _
  $region19: #{resmlp.1} parent=0 // pred_check_branch
    %25 = sbr.rel (0) target = $region21
  $region20: #{resmlp.1} parent=0 // pred_region
    _
  $region21: #{resmlp.1} parent=0 // pred_fallthru
    _
  // Predicated region
  $region22: #{resmlp.1} parent=0 // pred_check
    _
  $region23: #{resmlp.1} parent=0 // pred_check_branch
    %27 = sbr.rel (0) target = $region25
  $region24: #{resmlp.1} parent=0 // pred_region
    _
  $region25: #{resmlp.1} parent=0 // pred_fallthru
    _
  // Predicated region
  $region26: #{resmlp.1} parent=0 // pred_check
    _
  $region27: #{resmlp.1} parent=0 // pred_check_branch
    %29 = sbr.rel (0) target = $region29
  $region28: #{resmlp.1} parent=0 // pred_region
    _
  $region29: #{resmlp.1} parent=0 // pred_fallthru
    _
  // Predicated region
  $region30: #{resmlp.1} parent=0 // pred_check
    _
  $region31: #{resmlp.1} parent=0 // pred_check_branch
    %31 = sbr.rel (0) target = $region33
  $region32: #{resmlp.1} parent=0 // pred_region
    _
  $region33: #{resmlp.1} parent=0 // pred_fallthru
    _
  // Predicated region
  $region34: #{resmlp.1} parent=0 // pred_check
    _
  $region35: #{resmlp.1} parent=0 // pred_check_branch
    %33 = sbr.rel (0) target = $region37
  $region36: #{resmlp.1} parent=0 // pred_region
    _
  $region37: #{resmlp.1} parent=0 // pred_fallthru
    _
  // Predicated region
  $region38: #{resmlp.1} parent=0 // pred_check
    _
  $region39: #{resmlp.1} parent=0 // pred_check_branch
    %35 = sbr.rel (0) target = $region41
  $region40: #{resmlp.1} parent=0 // pred_region
    _
  $region41: #{resmlp.1} parent=0 // pred_fallthru
    _
  // Predicated region
  $region42: #{resmlp.1} parent=0 // pred_check
    _
  $region43: #{resmlp.1} parent=0 // pred_check_branch
    %37 = sbr.rel (0) target = $region45
  $region44: #{resmlp.1} parent=0 // pred_region
    _
  $region45: #{resmlp.1} parent=0 // pred_fallthru
    _
  %v39 = vld [vmem:[%s0] sm:$0xff]
  %v40 = vld [vmem:[%s0 + $0x8] sm:$0xff]
  %v41 = vld [vmem:[%s0 + $0x10] sm:$0xff]
  %v42 = vld [vmem:[%s0 + $0x18] sm:$0xff]
  %v43 = vld [vmem:[%s1] sm:$0xf]
  %v44 = vld [vmem:[%s1 + $0x4] sm:$0xf]
  %v45 = vld [vmem:[%s1 + $0x8] sm:$0xf]
  %v46 = vld [vmem:[%s1 + $0xc] sm:$0xf]
  %v47 = vld [vmem:[%s1 + $0x10] sm:$0xf]
  %v48 = vld [vmem:[%s1 + $0x14] sm:$0xf]
  %v49 = vld [vmem:[%s1 + $0x18] sm:$0xf]
  %v50 = vld [vmem:[%s1 + $0x1c] sm:$0xf]
  %v51 = vld [vmem:[%s2] sm:$0xff]
  %v52 = vld [vmem:[%s2 + $0x8] sm:$0xff]
  %v53 = vld [vmem:[%s2 + $0x10] sm:$0xff]
  %v54 = vld [vmem:[%s2 + $0x18] sm:$0xff]
  %v55 = vld [vmem:[%s2 + $0x20] sm:$0xff]
  %v56 = vld [vmem:[%s2 + $0x28] sm:$0xff]
  %v57 = vld [vmem:[%s2 + $0x30] sm:$0xff]
  %v58 = vld [vmem:[%s2 + $0x38] sm:$0xff]
  %60 = vset.pattern.permute.xlu0 0
  %61 = vperm.xlu0 %60, %v51
  %v62 = vpop.permute.xlu0 %61
  %65 = vset.pattern.permute.xlu0 0
  %66 = vperm.xlu0 %65, %v52
  %v67 = vpop.permute.xlu0 %66
  %70 = vset.pattern.permute.xlu0 0
  %71 = vperm.xlu0 %70, %v53
  %v72 = vpop.permute.xlu0 %71
  %75 = vset.pattern.permute.xlu0 0
  %76 = vperm.xlu0 %75, %v54
  %v77 = vpop.permute.xlu0 %76
  %80 = vset.pattern.permute.xlu0 0
  %81 = vperm.xlu0 %80, %v55
  %v82 = vpop.permute.xlu0 %81
  %85 = vset.pattern.permute.xlu0 0
  %86 = vperm.xlu0 %85, %v56
  %v87 = vpop.permute.xlu0 %86
  %90 = vset.pattern.permute.xlu0 0
  %91 = vperm.xlu0 %90, %v57
  %v92 = vpop.permute.xlu0 %91
  %95 = vset.pattern.permute.xlu0 0
  %96 = vperm.xlu0 %95, %v58
  %v97 = vpop.permute.xlu0 %96
  %v107 = vunpack.c.l.b16 %v43
  %v108 = vunpack.c.l.b16 %v44
  %v109 = vunpack.c.l.b16 %v45
  %v110 = vunpack.c.l.b16 %v46
  %v111 = vunpack.c.l.b16 %v47
  %v112 = vunpack.c.l.b16 %v48
  %v113 = vunpack.c.l.b16 %v49
  %v114 = vunpack.c.l.b16 %v50
  %v115 = vpack.c.b16 %v108, %v107
  %v116 = vpack.c.b16 %v110, %v109
  %v117 = vpack.c.b16 %v112, %v111
  %v118 = vpack.c.b16 %v114, %v113
  %v123 = vunpack.c.l.b16 %v39
  %v124 = vunpack.c.h.b16 %v39
  %v125 = vunpack.c.l.b16 %v40
  %v126 = vunpack.c.h.b16 %v40
  %v127 = vunpack.c.l.b16 %v41
  %v128 = vunpack.c.h.b16 %v41
  %v129 = vunpack.c.l.b16 %v42
  %v130 = vunpack.c.h.b16 %v42
  %v131 = vpack.c.b16 %v125, %v123
  %v132 = vpack.c.b16 %v126, %v124
  %v133 = vpack.c.b16 %v129, %v127
  %v134 = vpack.c.b16 %v130, %v128
  %vm139 = vcmask 261120
  %v141 = vsel %vm139, %v115, 0
  %v144 = vsel %vm139, %v116, 0
  %v147 = vsel %vm139, %v117, 0
  %v150 = vsel %vm139, %v118, 0
  %152 = vmatprep.subr.bf16.mxu0 0
  %153 = vmatpush1.bf16.msra.mxu0 0
  %154 = vmatprep.subr.bf16.mxu0 0
  %155 = vmatpush1.bf16.msra.mxu0 0
  %156 = vmatprep.subr.bf16.mxu0 0
  %157 = vmatpush1.bf16.msra.mxu0 0
  %158 = vmatprep.subr.bf16.mxu0 0
  %159 = vmatpush1.bf16.msra.mxu0 0
  %160 = vmatprep.subr.bf16.mxu0 0
  %161 = vmatpush1.bf16.msra.mxu0 0
  %162 = vmatprep.subr.bf16.mxu0 0
  %163 = vmatpush1.bf16.msra.mxu0 0
  %164 = vmatprep.subr.bf16.mxu0 %v134
  %165 = vmatpush1.bf16.msra.mxu0 %v133
  %166 = vmatprep.subr.bf16.mxu0 %v132
  %167 = vmatpush1.bf16.msra.mxu0 %v131
  %168 = vmatprep.subr.bf16.mxu0 0
  %169 = vmatpush2.bf16.msra.mxu0 0
  %170 = vmatprep.subr.bf16.mxu0 0
  %171 = vmatpush2.bf16.msra.mxu0 0
  %172 = vmatprep.subr.bf16.mxu0 0
  %173 = vmatpush2.bf16.msra.mxu0 0
  %174 = vmatprep.subr.bf16.mxu0 0
  %175 = vmatpush2.bf16.msra.mxu0 0
  %176 = vmatprep.subr.bf16.mxu0 0
  %177 = vmatpush2.bf16.msra.mxu0 0
  %178 = vmatprep.subr.bf16.mxu0 0
  %179 = vmatpush2.bf16.msra.mxu0 0
  %180 = vmatprep.subr.bf16.mxu0 0
  %181 = vmatpush2.bf16.msra.mxu0 0
  %182 = vmatprep.subr.bf16.mxu0 0
  %183 = vmatpush2.bf16.msra.mxu0 0
  %184 = vmatprep.mubr.bf16.mxu0 0
  %185 = vmatmul.mubr.bf16.gmra.mxu0 %v141
  %v186 = vpop.f32.mrf.mxu0
  %v187 = vadd.f32 %v62, %v186
  %v188 = vpop.f32.mrf.mxu0
  %v189 = vadd.f32 %v62, %v188
  %v190 = vpop.f32.mrf.mxu0
  %v191 = vadd.f32 %v67, %v190
  %v192 = vpop.f32.mrf.mxu0
  %v193 = vadd.f32 %v67, %v192
  %194 = vmatprep.mubr.bf16.mxu0 0
  %195 = vmatmul.mubr.bf16.gmra.mxu0 %v144
  %v196 = vpop.f32.mrf.mxu0
  %v197 = vadd.f32 %v72, %v196
  %v198 = vpop.f32.mrf.mxu0
  %v199 = vadd.f32 %v72, %v198
  %v200 = vpop.f32.mrf.mxu0
  %v201 = vadd.f32 %v77, %v200
  %v202 = vpop.f32.mrf.mxu0
  %v203 = vadd.f32 %v77, %v202
  %204 = vmatprep.mubr.bf16.mxu0 0
  %205 = vmatmul.mubr.bf16.gmra.mxu0 %v147
  %v206 = vpop.f32.mrf.mxu0
  %v207 = vadd.f32 %v82, %v206
  %v208 = vpop.f32.mrf.mxu0
  %v209 = vadd.f32 %v82, %v208
  %v210 = vpop.f32.mrf.mxu0
  %v211 = vadd.f32 %v87, %v210
  %v212 = vpop.f32.mrf.mxu0
  %v213 = vadd.f32 %v87, %v212
  %214 = vmatprep.mubr.bf16.mxu0 0
  %215 = vmatmul.mubr.bf16.gmra.mxu0 %v150
  %v216 = vpop.f32.mrf.mxu0
  %v217 = vadd.f32 %v92, %v216
  %v218 = vpop.f32.mrf.mxu0
  %v219 = vadd.f32 %v92, %v218
  %v220 = vpop.f32.mrf.mxu0
  %v221 = vadd.f32 %v97, %v220
  %v222 = vpop.f32.mrf.mxu0
  %v223 = vadd.f32 %v97, %v222
  %224 = vdwg.mxu0
  %v225 = vld [vmem:[%s3] sm:$0xff]
  %v226 = vld [vmem:[%s3 + $0x8] sm:$0xff]
  %v227 = vld [vmem:[%s3 + $0x10] sm:$0xff]
  %v228 = vld [vmem:[%s3 + $0x18] sm:$0xff]
  %v229 = vld [vmem:[%s3 + $0x20] sm:$0xff]
  %v230 = vld [vmem:[%s3 + $0x28] sm:$0xff]
  %v231 = vld [vmem:[%s3 + $0x30] sm:$0xff]
  %v232 = vld [vmem:[%s3 + $0x38] sm:$0xff]
  %v233 = vld [vmem:[%s4] sm:$0xff]
  %v234 = vld [vmem:[%s4 + $0x8] sm:$0xff]
  %v235 = vld [vmem:[%s4 + $0x10] sm:$0xff]
  %v236 = vld [vmem:[%s4 + $0x18] sm:$0xff]
  %v237 = vld [vmem:[%s4 + $0x20] sm:$0xff]
  %v238 = vld [vmem:[%s4 + $0x28] sm:$0xff]
  %v239 = vld [vmem:[%s4 + $0x30] sm:$0xff]
  %v240 = vld [vmem:[%s4 + $0x38] sm:$0xff]
  %v241 = vadd.f32 %v187, %v191
  %v242 = vadd.f32 %v241, %v197
  %v243 = vadd.f32 %v242, %v201
  %v244 = vadd.f32 %v243, %v207
  %v245 = vadd.f32 %v244, %v211
  %v246 = vadd.f32 %v245, %v217
  %v247 = vadd.f32 %v246, %v221
  %v248 = vrot.slane %v247, 4
  %v249 = vadd.f32 %v247, %v248
  %v250 = vrot.slane %v249, 2
  %v251 = vadd.f32 %v249, %v250
  %v252 = vrot.slane %v251, 1
  %v253 = vadd.f32 %v251, %v252
  %v254 = vadd.f32 %v189, %v193
  %v255 = vadd.f32 %v254, %v199
  %v256 = vadd.f32 %v255, %v203
  %v257 = vadd.f32 %v256, %v209
  %v258 = vadd.f32 %v257, %v213
  %v259 = vadd.f32 %v258, %v219
  %v260 = vadd.f32 %v259, %v223
  %v261 = vrot.slane %v260, 4
  %v262 = vadd.f32 %v260, %v261
  %v263 = vrot.slane %v262, 2
  %v264 = vadd.f32 %v262, %v263
  %v265 = vrot.slane %v264, 1
  %v266 = vadd.f32 %v264, %v265
  %v267 = vrcp.pop 64.0
  %v268 = vmul.f32 %v253, %v267
  %v269 = vmul.f32 %v266, %v267
  %v270 = vsub.f32 %v187, %v268
  %v271 = vsub.f32 %v189, %v269
  %v272 = vsub.f32 %v191, %v268
  %v273 = vsub.f32 %v193, %v269
  %v274 = vsub.f32 %v197, %v268
  %v275 = vsub.f32 %v199, %v269
  %v276 = vsub.f32 %v201, %v268
  %v277 = vsub.f32 %v203, %v269
  %v278 = vsub.f32 %v207, %v268
  %v279 = vsub.f32 %v209, %v269
  %v280 = vsub.f32 %v211, %v268
  %v281 = vsub.f32 %v213, %v269
  %v282 = vsub.f32 %v217, %v268
  %v283 = vsub.f32 %v219, %v269
  %v284 = vsub.f32 %v221, %v268
  %v285 = vsub.f32 %v223, %v269
  %v286 = vmul.f32 %v270, %v270
  %v287 = vmul.f32 %v271, %v271
  %v288 = vmul.f32 %v272, %v272
  %v289 = vmul.f32 %v273, %v273
  %v290 = vmul.f32 %v274, %v274
  %v291 = vmul.f32 %v275, %v275
  %v292 = vmul.f32 %v276, %v276
  %v293 = vmul.f32 %v277, %v277
  %v294 = vmul.f32 %v278, %v278
  %v295 = vmul.f32 %v279, %v279
  %v296 = vmul.f32 %v280, %v280
  %v297 = vmul.f32 %v281, %v281
  %v298 = vmul.f32 %v282, %v282
  %v299 = vmul.f32 %v283, %v283
  %v300 = vmul.f32 %v284, %v284
  %v301 = vmul.f32 %v285, %v285
  %v302 = vadd.f32 %v286, %v288
  %v303 = vadd.f32 %v302, %v290
  %v304 = vadd.f32 %v303, %v292
  %v305 = vadd.f32 %v304, %v294
  %v306 = vadd.f32 %v305, %v296
  %v307 = vadd.f32 %v306, %v298
  %v308 = vadd.f32 %v307, %v300
  %v309 = vrot.slane %v308, 4
  %v310 = vadd.f32 %v308, %v309
  %v311 = vrot.slane %v310, 2
  %v312 = vadd.f32 %v310, %v311
  %v313 = vrot.slane %v312, 1
  %v314 = vadd.f32 %v312, %v313
  %v315 = vadd.f32 %v287, %v289
  %v316 = vadd.f32 %v315, %v291
  %v317 = vadd.f32 %v316, %v293
  %v318 = vadd.f32 %v317, %v295
  %v319 = vadd.f32 %v318, %v297
  %v320 = vadd.f32 %v319, %v299
  %v321 = vadd.f32 %v320, %v301
  %v322 = vrot.slane %v321, 4
  %v323 = vadd.f32 %v321, %v322
  %v324 = vrot.slane %v323, 2
  %v325 = vadd.f32 %v323, %v324
  %v326 = vrot.slane %v325, 1
  %v327 = vadd.f32 %v325, %v326
  %v328 = vmul.f32 %v314, %v267
  %v329 = vmul.f32 %v327, %v267
  %v330 = vadd.f32 %v328, 1e-05
  %v331 = vadd.f32 %v329, 1e-05
  %v332 = vrsqrt.pop %v330
  %v333 = vrsqrt.pop %v331
  %v334 = vmul.f32 %v270, %v332
  %v335 = vmul.f32 %v271, %v333
  %v336 = vmul.f32 %v272, %v332
  %v337 = vmul.f32 %v273, %v333
  %v338 = vmul.f32 %v274, %v332
  %v339 = vmul.f32 %v275, %v333
  %v340 = vmul.f32 %v276, %v332
  %v341 = vmul.f32 %v277, %v333
  %v342 = vmul.f32 %v278, %v332
  %v343 = vmul.f32 %v279, %v333
  %v344 = vmul.f32 %v280, %v332
  %v345 = vmul.f32 %v281, %v333
  %v346 = vmul.f32 %v282, %v332
  %v347 = vmul.f32 %v283, %v333
  %v348 = vmul.f32 %v284, %v332
  %v349 = vmul.f32 %v285, %v333
  %351 = vset.pattern.permute.xlu0 0
  %352 = vperm.xlu0 %351, %v225
  %v353 = vpop.permute.xlu0 %352
  %356 = vset.pattern.permute.xlu0 0
  %357 = vperm.xlu0 %356, %v226
  %v358 = vpop.permute.xlu0 %357
  %361 = vset.pattern.permute.xlu0 0
  %362 = vperm.xlu0 %361, %v227
  %v363 = vpop.permute.xlu0 %362
  %366 = vset.pattern.permute.xlu0 0
  %367 = vperm.xlu0 %366, %v228
  %v368 = vpop.permute.xlu0 %367
  %371 = vset.pattern.permute.xlu0 0
  %372 = vperm.xlu0 %371, %v229
  %v373 = vpop.permute.xlu0 %372
  %376 = vset.pattern.permute.xlu0 0
  %377 = vperm.xlu0 %376, %v230
  %v378 = vpop.permute.xlu0 %377
  %381 = vset.pattern.permute.xlu0 0
  %382 = vperm.xlu0 %381, %v231
  %v383 = vpop.permute.xlu0 %382
  %386 = vset.pattern.permute.xlu0 0
  %387 = vperm.xlu0 %386, %v232
  %v388 = vpop.permute.xlu0 %387
  %v390 = vmul.f32 %v334, %v353
  %v391 = vmul.f32 %v335, %v353
  %v392 = vmul.f32 %v336, %v358
  %v393 = vmul.f32 %v337, %v358
  %v394 = vmul.f32 %v338, %v363
  %v395 = vmul.f32 %v339, %v363
  %v396 = vmul.f32 %v340, %v368
  %v397 = vmul.f32 %v341, %v368
  %v398 = vmul.f32 %v342, %v373
  %v399 = vmul.f32 %v343, %v373
  %v400 = vmul.f32 %v344, %v378
  %v401 = vmul.f32 %v345, %v378
  %v402 = vmul.f32 %v346, %v383
  %v403 = vmul.f32 %v347, %v383
  %v404 = vmul.f32 %v348, %v388
  %v405 = vmul.f32 %v349, %v388
  %407 = vset.pattern.permute.xlu0 0
  %408 = vperm.xlu0 %407, %v233
  %v409 = vpop.permute.xlu0 %408
  %412 = vset.pattern.permute.xlu0 0
  %413 = vperm.xlu0 %412, %v234
  %v414 = vpop.permute.xlu0 %413
  %417 = vset.pattern.permute.xlu0 0
  %418 = vperm.xlu0 %417, %v235
  %v419 = vpop.permute.xlu0 %418
  %422 = vset.pattern.permute.xlu0 0
  %423 = vperm.xlu0 %422, %v236
  %v424 = vpop.permute.xlu0 %423
  %427 = vset.pattern.permute.xlu0 0
  %428 = vperm.xlu0 %427, %v237
  %v429 = vpop.permute.xlu0 %428
  %432 = vset.pattern.permute.xlu0 0
  %433 = vperm.xlu0 %432, %v238
  %v434 = vpop.permute.xlu0 %433
  %437 = vset.pattern.permute.xlu0 0
  %438 = vperm.xlu0 %437, %v239
  %v439 = vpop.permute.xlu0 %438
  %442 = vset.pattern.permute.xlu0 0
  %443 = vperm.xlu0 %442, %v240
  %v444 = vpop.permute.xlu0 %443
  %v446 = vadd.f32 %v390, %v409
  %v447 = vadd.f32 %v391, %v409
  %v448 = vadd.f32 %v392, %v414
  %v449 = vadd.f32 %v393, %v414
  %v450 = vadd.f32 %v394, %v419
  %v451 = vadd.f32 %v395, %v419
  %v452 = vadd.f32 %v396, %v424
  %v453 = vadd.f32 %v397, %v424
  %v454 = vadd.f32 %v398, %v429
  %v455 = vadd.f32 %v399, %v429
  %v456 = vadd.f32 %v400, %v434
  %v457 = vadd.f32 %v401, %v434
  %v458 = vadd.f32 %v402, %v439
  %v459 = vadd.f32 %v403, %v439
  %v460 = vadd.f32 %v404, %v444
  %v461 = vadd.f32 %v405, %v444
  %v462 = vmul.f32 %v446, 0.5
  %v463 = vmul.f32 %v447, 0.5
  %v464 = vmul.f32 %v448, 0.5
  %v465 = vmul.f32 %v449, 0.5
  %v466 = vmul.f32 %v450, 0.5
  %v467 = vmul.f32 %v451, 0.5
  %v468 = vmul.f32 %v452, 0.5
  %v469 = vmul.f32 %v453, 0.5
  %v470 = vmul.f32 %v454, 0.5
  %v471 = vmul.f32 %v455, 0.5
  %v472 = vmul.f32 %v456, 0.5
  %v473 = vmul.f32 %v457, 0.5
  %v474 = vmul.f32 %v458, 0.5
  %v475 = vmul.f32 %v459, 0.5
  %v476 = vmul.f32 %v460, 0.5
  %v477 = vmul.f32 %v461, 0.5
  %v478 = vmul.f32 %v446, %v446
  %v479 = vmul.f32 %v447, %v447
  %v480 = vmul.f32 %v448, %v448
  %v481 = vmul.f32 %v449, %v449
  %v482 = vmul.f32 %v450, %v450
  %v483 = vmul.f32 %v451, %v451
  %v484 = vmul.f32 %v452, %v452
  %v485 = vmul.f32 %v453, %v453
  %v486 = vmul.f32 %v454, %v454
  %v487 = vmul.f32 %v455, %v455
  %v488 = vmul.f32 %v456, %v456
  %v489 = vmul.f32 %v457, %v457
  %v490 = vmul.f32 %v458, %v458
  %v491 = vmul.f32 %v459, %v459
  %v492 = vmul.f32 %v460, %v460
  %v493 = vmul.f32 %v461, %v461
  %v494 = vmul.f32 %v478, %v446
  %v495 = vmul.f32 %v479, %v447
  %v496 = vmul.f32 %v480, %v448
  %v497 = vmul.f32 %v481, %v449
  %v498 = vmul.f32 %v482, %v450
  %v499 = vmul.f32 %v483, %v451
  %v500 = vmul.f32 %v484, %v452
  %v501 = vmul.f32 %v485, %v453
  %v502 = vmul.f32 %v486, %v454
  %v503 = vmul.f32 %v487, %v455
  %v504 = vmul.f32 %v488, %v456
  %v505 = vmul.f32 %v489, %v457
  %v506 = vmul.f32 %v490, %v458
  %v507 = vmul.f32 %v491, %v459
  %v508 = vmul.f32 %v492, %v460
  %v509 = vmul.f32 %v493, %v461
  %v510 = vmul.f32 %v494, 0.044715
  %v511 = vmul.f32 %v495, 0.044715
  %v512 = vmul.f32 %v496, 0.044715
  %v513 = vmul.f32 %v497, 0.044715
  %v514 = vmul.f32 %v498, 0.044715
  %v515 = vmul.f32 %v499, 0.044715
  %v516 = vmul.f32 %v500, 0.044715
  %v517 = vmul.f32 %v501, 0.044715
  %v518 = vmul.f32 %v502, 0.044715
  %v519 = vmul.f32 %v503, 0.044715
  %v520 = vmul.f32 %v504, 0.044715
  %v521 = vmul.f32 %v505, 0.044715
  %v522 = vmul.f32 %v506, 0.044715
  %v523 = vmul.f32 %v507, 0.044715
  %v524 = vmul.f32 %v508, 0.044715
  %v525 = vmul.f32 %v509, 0.044715
  %v526 = vadd.f32 %v446, %v510
  %v527 = vadd.f32 %v447, %v511
  %v528 = vadd.f32 %v448, %v512
  %v529 = vadd.f32 %v449, %v513
  %v530 = vadd.f32 %v450, %v514
  %v531 = vadd.f32 %v451, %v515
  %v532 = vadd.f32 %v452, %v516
  %v533 = vadd.f32 %v453, %v517
  %v534 = vadd.f32 %v454, %v518
  %v535 = vadd.f32 %v455, %v519
  %v536 = vadd.f32 %v456, %v520
  %v537 = vadd.f32 %v457, %v521
  %v538 = vadd.f32 %v458, %v522
  %v539 = vadd.f32 %v459, %v523
  %v540 = vadd.f32 %v460, %v524
  %v541 = vadd.f32 %v461, %v525
  %v542 = vmul.f32 %v526, 0.7978846
  %v543 = vmul.f32 %v527, 0.7978846
  %v544 = vmul.f32 %v528, 0.7978846
  %v545 = vmul.f32 %v529, 0.7978846
  %v546 = vmul.f32 %v530, 0.7978846
  %v547 = vmul.f32 %v531, 0.7978846
  %v548 = vmul.f32 %v532, 0.7978846
  %v549 = vmul.f32 %v533, 0.7978846
  %v550 = vmul.f32 %v534, 0.7978846
  %v551 = vmul.f32 %v535, 0.7978846
  %v552 = vmul.f32 %v536, 0.7978846
  %v553 = vmul.f32 %v537, 0.7978846
  %v554 = vmul.f32 %v538, 0.7978846
  %v555 = vmul.f32 %v539, 0.7978846
  %v556 = vmul.f32 %v540, 0.7978846
  %v557 = vmul.f32 %v541, 0.7978846
  %v558 = vtanh.pop %v542
  %v559 = vtanh.pop %v543
  %v560 = vtanh.pop %v544
  %v561 = vtanh.pop %v545
  %v562 = vtanh.pop %v546
  %v563 = vtanh.pop %v547
  %v564 = vtanh.pop %v548
  %v565 = vtanh.pop %v549
  %v566 = vtanh.pop %v550
  %v567 = vtanh.pop %v551
  %v568 = vtanh.pop %v552
  %v569 = vtanh.pop %v553
  %v570 = vtanh.pop %v554
  %v571 = vtanh.pop %v555
  %v572 = vtanh.pop %v556
  %v573 = vtanh.pop %v557
  %v574 = vadd.f32 %v558, 1.0
  %v575 = vadd.f32 %v559, 1.0
  %v576 = vadd.f32 %v560, 1.0
  %v577 = vadd.f32 %v561, 1.0
  %v578 = vadd.f32 %v562, 1.0
  %v579 = vadd.f32 %v563, 1.0
  %v580 = vadd.f32 %v564, 1.0
  %v581 = vadd.f32 %v565, 1.0
  %v582 = vadd.f32 %v566, 1.0
  %v583 = vadd.f32 %v567, 1.0
  %v584 = vadd.f32 %v568, 1.0
  %v585 = vadd.f32 %v569, 1.0
  %v586 = vadd.f32 %v570, 1.0
  %v587 = vadd.f32 %v571, 1.0
  %v588 = vadd.f32 %v572, 1.0
  %v589 = vadd.f32 %v573, 1.0
  %v590 = vmul.f32 %v462, %v574
  %v591 = vmul.f32 %v463, %v575
  %v592 = vmul.f32 %v464, %v576
  %v593 = vmul.f32 %v465, %v577
  %v594 = vmul.f32 %v466, %v578
  %v595 = vmul.f32 %v467, %v579
  %v596 = vmul.f32 %v468, %v580
  %v597 = vmul.f32 %v469, %v581
  %v598 = vmul.f32 %v470, %v582
  %v599 = vmul.f32 %v471, %v583
  %v600 = vmul.f32 %v472, %v584
  %v601 = vmul.f32 %v473, %v585
  %v602 = vmul.f32 %v474, %v586
  %v603 = vmul.f32 %v475, %v587
  %v604 = vmul.f32 %v476, %v588
  %v605 = vmul.f32 %v477, %v589
  %v606 = vld [vmem:[%s5] sm:$0xf]
  %v607 = vld [vmem:[%s5 + $0x4] sm:$0xf]
  %v608 = vld [vmem:[%s5 + $0x8] sm:$0xf]
  %v609 = vld [vmem:[%s5 + $0xc] sm:$0xf]
  %v610 = vld [vmem:[%s5 + $0x10] sm:$0xf]
  %v611 = vld [vmem:[%s5 + $0x14] sm:$0xf]
  %v612 = vld [vmem:[%s5 + $0x18] sm:$0xf]
  %v613 = vld [vmem:[%s5 + $0x1c] sm:$0xf]
  %v614 = vpack.c.bf16 %v592, %v590
  %v615 = vpack.c.bf16 %v593, %v591
  %v616 = vpack.c.bf16 %v596, %v594
  %v617 = vpack.c.bf16 %v597, %v595
  %v618 = vpack.c.bf16 %v600, %v598
  %v619 = vpack.c.bf16 %v601, %v599
  %v620 = vpack.c.bf16 %v604, %v602
  %v621 = vpack.c.bf16 %v605, %v603
  %v622 = vld [vmem:[%s6] sm:$0xff]
  %v623 = vld [vmem:[%s6 + $0x8] sm:$0xff]
  %v624 = vld [vmem:[%s6 + $0x10] sm:$0xff]
  %v625 = vld [vmem:[%s6 + $0x18] sm:$0xff]
  %v626 = vld [vmem:[%s6 + $0x20] sm:$0xff]
  %v627 = vld [vmem:[%s6 + $0x28] sm:$0xff]
  %v628 = vld [vmem:[%s6 + $0x30] sm:$0xff]
  %v629 = vld [vmem:[%s6 + $0x38] sm:$0xff]
  %631 = vset.pattern.permute.xlu0 0
  %632 = vperm.xlu0 %631, %v622
  %v633 = vpop.permute.xlu0 %632
  %636 = vset.pattern.permute.xlu0 0
  %637 = vperm.xlu0 %636, %v623
  %v638 = vpop.permute.xlu0 %637
  %641 = vset.pattern.permute.xlu0 0
  %642 = vperm.xlu0 %641, %v624
  %v643 = vpop.permute.xlu0 %642
  %646 = vset.pattern.permute.xlu0 0
  %647 = vperm.xlu0 %646, %v625
  %v648 = vpop.permute.xlu0 %647
  %651 = vset.pattern.permute.xlu0 0
  %652 = vperm.xlu0 %651, %v626
  %v653 = vpop.permute.xlu0 %652
  %656 = vset.pattern.permute.xlu0 0
  %657 = vperm.xlu0 %656, %v627
  %v658 = vpop.permute.xlu0 %657
  %661 = vset.pattern.permute.xlu0 0
  %662 = vperm.xlu0 %661, %v628
  %v663 = vpop.permute.xlu0 %662
  %666 = vset.pattern.permute.xlu0 0
  %667 = vperm.xlu0 %666, %v629
  %v668 = vpop.permute.xlu0 %667
  %v678 = vunpack.c.l.b16 %v606
  %v679 = vunpack.c.l.b16 %v607
  %v680 = vunpack.c.l.b16 %v608
  %v681 = vunpack.c.l.b16 %v609
  %v682 = vunpack.c.l.b16 %v610
  %v683 = vunpack.c.l.b16 %v611
  %v684 = vunpack.c.l.b16 %v612
  %v685 = vunpack.c.l.b16 %v613
  %v686 = vpack.c.b16 %v679, %v678
  %v687 = vpack.c.b16 %v681, %v680
  %v688 = vpack.c.b16 %v683, %v682
  %v689 = vpack.c.b16 %v685, %v684
  %vm690 = vcmask 523264
  %v692 = vsel %vm690, %v686, 0
  %v695 = vsel %vm690, %v687, 0
  %v698 = vsel %vm690, %v688, 0
  %v701 = vsel %vm690, %v689, 0
  %703 = vmatprep.subr.bf16.mxu0 0
  %704 = vmatpush1.bf16.msra.mxu0 0
  %705 = vmatprep.subr.bf16.mxu0 0
  %706 = vmatpush1.bf16.msra.mxu0 0
  %707 = vmatprep.subr.bf16.mxu0 0
  %708 = vmatpush1.bf16.msra.mxu0 0
  %709 = vmatprep.subr.bf16.mxu0 0
  %710 = vmatpush1.bf16.msra.mxu0 0
  %711 = vmatprep.subr.bf16.mxu0 %v621
  %712 = vmatpush1.bf16.msra.mxu0 %v620
  %713 = vmatprep.subr.bf16.mxu0 %v619
  %714 = vmatpush1.bf16.msra.mxu0 %v618
  %715 = vmatprep.subr.bf16.mxu0 %v617
  %716 = vmatpush1.bf16.msra.mxu0 %v616
  %717 = vmatprep.subr.bf16.mxu0 %v615
  %718 = vmatpush1.bf16.msra.mxu0 %v614
  %719 = vmatprep.subr.bf16.mxu0 0
  %720 = vmatpush2.bf16.msra.mxu0 0
  %721 = vmatprep.subr.bf16.mxu0 0
  %722 = vmatpush2.bf16.msra.mxu0 0
  %723 = vmatprep.subr.bf16.mxu0 0
  %724 = vmatpush2.bf16.msra.mxu0 0
  %725 = vmatprep.subr.bf16.mxu0 0
  %726 = vmatpush2.bf16.msra.mxu0 0
  %727 = vmatprep.subr.bf16.mxu0 0
  %728 = vmatpush2.bf16.msra.mxu0 0
  %729 = vmatprep.subr.bf16.mxu0 0
  %730 = vmatpush2.bf16.msra.mxu0 0
  %731 = vmatprep.subr.bf16.mxu0 0
  %732 = vmatpush2.bf16.msra.mxu0 0
  %733 = vmatprep.subr.bf16.mxu0 0
  %734 = vmatpush2.bf16.msra.mxu0 0
  %735 = vmatprep.mubr.bf16.mxu0 0
  %736 = vmatmul.mubr.bf16.gmra.mxu0 %v692
  %v737 = vpop.f32.mrf.mxu0
  %v738 = vadd.f32 %v633, %v737
  %v739 = vpop.f32.mrf.mxu0
  %v740 = vadd.f32 %v633, %v739
  %v741 = vpop.f32.mrf.mxu0
  %v742 = vadd.f32 %v638, %v741
  %v743 = vpop.f32.mrf.mxu0
  %v744 = vadd.f32 %v638, %v743
  %745 = vmatprep.mubr.bf16.mxu0 0
  %746 = vmatmul.mubr.bf16.gmra.mxu0 %v695
  %v747 = vpop.f32.mrf.mxu0
  %v748 = vadd.f32 %v643, %v747
  %v749 = vpop.f32.mrf.mxu0
  %v750 = vadd.f32 %v643, %v749
  %v751 = vpop.f32.mrf.mxu0
  %v752 = vadd.f32 %v648, %v751
  %v753 = vpop.f32.mrf.mxu0
  %v754 = vadd.f32 %v648, %v753
  %755 = vmatprep.mubr.bf16.mxu0 0
  %756 = vmatmul.mubr.bf16.gmra.mxu0 %v698
  %v757 = vpop.f32.mrf.mxu0
  %v758 = vadd.f32 %v653, %v757
  %v759 = vpop.f32.mrf.mxu0
  %v760 = vadd.f32 %v653, %v759
  %v761 = vpop.f32.mrf.mxu0
  %v762 = vadd.f32 %v658, %v761
  %v763 = vpop.f32.mrf.mxu0
  %v764 = vadd.f32 %v658, %v763
  %765 = vmatprep.mubr.bf16.mxu0 0
  %766 = vmatmul.mubr.bf16.gmra.mxu0 %v701
  %v767 = vpop.f32.mrf.mxu0
  %v768 = vadd.f32 %v663, %v767
  %v769 = vpop.f32.mrf.mxu0
  %v770 = vadd.f32 %v663, %v769
  %v771 = vpop.f32.mrf.mxu0
  %v772 = vadd.f32 %v668, %v771
  %v773 = vpop.f32.mrf.mxu0
  %v774 = vadd.f32 %v668, %v773
  %775 = vdwg.mxu0
  %v776 = vld [vmem:[%s7] sm:$0xff]
  %v777 = vld [vmem:[%s7 + $0x8] sm:$0xff]
  %v778 = vld [vmem:[%s7 + $0x10] sm:$0xff]
  %v779 = vld [vmem:[%s7 + $0x18] sm:$0xff]
  %v780 = vld [vmem:[%s7 + $0x20] sm:$0xff]
  %v781 = vld [vmem:[%s7 + $0x28] sm:$0xff]
  %v782 = vld [vmem:[%s7 + $0x30] sm:$0xff]
  %v783 = vld [vmem:[%s7 + $0x38] sm:$0xff]
  %v784 = vld [vmem:[%s8] sm:$0xff]
  %v785 = vld [vmem:[%s8 + $0x8] sm:$0xff]
  %v786 = vld [vmem:[%s8 + $0x10] sm:$0xff]
  %v787 = vld [vmem:[%s8 + $0x18] sm:$0xff]
  %v788 = vld [vmem:[%s8 + $0x20] sm:$0xff]
  %v789 = vld [vmem:[%s8 + $0x28] sm:$0xff]
  %v790 = vld [vmem:[%s8 + $0x30] sm:$0xff]
  %v791 = vld [vmem:[%s8 + $0x38] sm:$0xff]
  %v792 = vadd.f32 %v738, %v742
  %v793 = vadd.f32 %v792, %v748
  %v794 = vadd.f32 %v793, %v752
  %v795 = vadd.f32 %v794, %v758
  %v796 = vadd.f32 %v795, %v762
  %v797 = vadd.f32 %v796, %v768
  %v798 = vadd.f32 %v797, %v772
  %v799 = vrot.slane %v798, 4
  %v800 = vadd.f32 %v798, %v799
  %v801 = vrot.slane %v800, 2
  %v802 = vadd.f32 %v800, %v801
  %v803 = vrot.slane %v802, 1
  %v804 = vadd.f32 %v802, %v803
  %v805 = vadd.f32 %v740, %v744
  %v806 = vadd.f32 %v805, %v750
  %v807 = vadd.f32 %v806, %v754
  %v808 = vadd.f32 %v807, %v760
  %v809 = vadd.f32 %v808, %v764
  %v810 = vadd.f32 %v809, %v770
  %v811 = vadd.f32 %v810, %v774
  %v812 = vrot.slane %v811, 4
  %v813 = vadd.f32 %v811, %v812
  %v814 = vrot.slane %v813, 2
  %v815 = vadd.f32 %v813, %v814
  %v816 = vrot.slane %v815, 1
  %v817 = vadd.f32 %v815, %v816
  %v818 = vmul.f32 %v804, %v267
  %v819 = vmul.f32 %v817, %v267
  %v820 = vsub.f32 %v738, %v818
  %v821 = vsub.f32 %v740, %v819
  %v822 = vsub.f32 %v742, %v818
  %v823 = vsub.f32 %v744, %v819
  %v824 = vsub.f32 %v748, %v818
  %v825 = vsub.f32 %v750, %v819
  %v826 = vsub.f32 %v752, %v818
  %v827 = vsub.f32 %v754, %v819
  %v828 = vsub.f32 %v758, %v818
  %v829 = vsub.f32 %v760, %v819
  %v830 = vsub.f32 %v762, %v818
  %v831 = vsub.f32 %v764, %v819
  %v832 = vsub.f32 %v768, %v818
  %v833 = vsub.f32 %v770, %v819
  %v834 = vsub.f32 %v772, %v818
  %v835 = vsub.f32 %v774, %v819
  %v836 = vmul.f32 %v820, %v820
  %v837 = vmul.f32 %v821, %v821
  %v838 = vmul.f32 %v822, %v822
  %v839 = vmul.f32 %v823, %v823
  %v840 = vmul.f32 %v824, %v824
  %v841 = vmul.f32 %v825, %v825
  %v842 = vmul.f32 %v826, %v826
  %v843 = vmul.f32 %v827, %v827
  %v844 = vmul.f32 %v828, %v828
  %v845 = vmul.f32 %v829, %v829
  %v846 = vmul.f32 %v830, %v830
  %v847 = vmul.f32 %v831, %v831
  %v848 = vmul.f32 %v832, %v832
  %v849 = vmul.f32 %v833, %v833
  %v850 = vmul.f32 %v834, %v834
  %v851 = vmul.f32 %v835, %v835
  %v852 = vadd.f32 %v836, %v838
  %v853 = vadd.f32 %v852, %v840
  %v854 = vadd.f32 %v853, %v842
  %v855 = vadd.f32 %v854, %v844
  %v856 = vadd.f32 %v855, %v846
  %v857 = vadd.f32 %v856, %v848
  %v858 = vadd.f32 %v857, %v850
  %v859 = vrot.slane %v858, 4
  %v860 = vadd.f32 %v858, %v859
  %v861 = vrot.slane %v860, 2
  %v862 = vadd.f32 %v860, %v861
  %v863 = vrot.slane %v862, 1
  %v864 = vadd.f32 %v862, %v863
  %v865 = vadd.f32 %v837, %v839
  %v866 = vadd.f32 %v865, %v841
  %v867 = vadd.f32 %v866, %v843
  %v868 = vadd.f32 %v867, %v845
  %v869 = vadd.f32 %v868, %v847
  %v870 = vadd.f32 %v869, %v849
  %v871 = vadd.f32 %v870, %v851
  %v872 = vrot.slane %v871, 4
  %v873 = vadd.f32 %v871, %v872
  %v874 = vrot.slane %v873, 2
  %v875 = vadd.f32 %v873, %v874
  %v876 = vrot.slane %v875, 1
  %v877 = vadd.f32 %v875, %v876
  %v878 = vmul.f32 %v864, %v267
  %v879 = vmul.f32 %v877, %v267
  %v880 = vadd.f32 %v878, 1e-05
  %v881 = vadd.f32 %v879, 1e-05
  %v882 = vrsqrt.pop %v880
  %v883 = vrsqrt.pop %v881
  %v884 = vmul.f32 %v820, %v882
  %v885 = vmul.f32 %v821, %v883
  %v886 = vmul.f32 %v822, %v882
  %v887 = vmul.f32 %v823, %v883
  %v888 = vmul.f32 %v824, %v882
  %v889 = vmul.f32 %v825, %v883
  %v890 = vmul.f32 %v826, %v882
  %v891 = vmul.f32 %v827, %v883
  %v892 = vmul.f32 %v828, %v882
  %v893 = vmul.f32 %v829, %v883
  %v894 = vmul.f32 %v830, %v882
  %v895 = vmul.f32 %v831, %v883
  %v896 = vmul.f32 %v832, %v882
  %v897 = vmul.f32 %v833, %v883
  %v898 = vmul.f32 %v834, %v882
  %v899 = vmul.f32 %v835, %v883
  %901 = vset.pattern.permute.xlu0 0
  %902 = vperm.xlu0 %901, %v776
  %v903 = vpop.permute.xlu0 %902
  %906 = vset.pattern.permute.xlu0 0
  %907 = vperm.xlu0 %906, %v777
  %v908 = vpop.permute.xlu0 %907
  %911 = vset.pattern.permute.xlu0 0
  %912 = vperm.xlu0 %911, %v778
  %v913 = vpop.permute.xlu0 %912
  %916 = vset.pattern.permute.xlu0 0
  %917 = vperm.xlu0 %916, %v779
  %v918 = vpop.permute.xlu0 %917
  %921 = vset.pattern.permute.xlu0 0
  %922 = vperm.xlu0 %921, %v780
  %v923 = vpop.permute.xlu0 %922
  %926 = vset.pattern.permute.xlu0 0
  %927 = vperm.xlu0 %926, %v781
  %v928 = vpop.permute.xlu0 %927
  %931 = vset.pattern.permute.xlu0 0
  %932 = vperm.xlu0 %931, %v782
  %v933 = vpop.permute.xlu0 %932
  %936 = vset.pattern.permute.xlu0 0
  %937 = vperm.xlu0 %936, %v783
  %v938 = vpop.permute.xlu0 %937
  %v940 = vmul.f32 %v884, %v903
  %v941 = vmul.f32 %v885, %v903
  %v942 = vmul.f32 %v886, %v908
  %v943 = vmul.f32 %v887, %v908
  %v944 = vmul.f32 %v888, %v913
  %v945 = vmul.f32 %v889, %v913
  %v946 = vmul.f32 %v890, %v918
  %v947 = vmul.f32 %v891, %v918
  %v948 = vmul.f32 %v892, %v923
  %v949 = vmul.f32 %v893, %v923
  %v950 = vmul.f32 %v894, %v928
  %v951 = vmul.f32 %v895, %v928
  %v952 = vmul.f32 %v896, %v933
  %v953 = vmul.f32 %v897, %v933
  %v954 = vmul.f32 %v898, %v938
  %v955 = vmul.f32 %v899, %v938
  %957 = vset.pattern.permute.xlu0 0
  %958 = vperm.xlu0 %957, %v784
  %v959 = vpop.permute.xlu0 %958
  %962 = vset.pattern.permute.xlu0 0
  %963 = vperm.xlu0 %962, %v785
  %v964 = vpop.permute.xlu0 %963
  %967 = vset.pattern.permute.xlu0 0
  %968 = vperm.xlu0 %967, %v786
  %v969 = vpop.permute.xlu0 %968
  %972 = vset.pattern.permute.xlu0 0
  %973 = vperm.xlu0 %972, %v787
  %v974 = vpop.permute.xlu0 %973
  %977 = vset.pattern.permute.xlu0 0
  %978 = vperm.xlu0 %977, %v788
  %v979 = vpop.permute.xlu0 %978
  %982 = vset.pattern.permute.xlu0 0
  %983 = vperm.xlu0 %982, %v789
  %v984 = vpop.permute.xlu0 %983
  %987 = vset.pattern.permute.xlu0 0
  %988 = vperm.xlu0 %987, %v790
  %v989 = vpop.permute.xlu0 %988
  %992 = vset.pattern.permute.xlu0 0
  %993 = vperm.xlu0 %992, %v791
  %v994 = vpop.permute.xlu0 %993
  %v996 = vadd.f32 %v940, %v959
  %v997 = vadd.f32 %v941, %v959
  %v998 = vadd.f32 %v942, %v964
  %v999 = vadd.f32 %v943, %v964
  %v1000 = vadd.f32 %v944, %v969
  %v1001 = vadd.f32 %v945, %v969
  %v1002 = vadd.f32 %v946, %v974
  %v1003 = vadd.f32 %v947, %v974
  %v1004 = vadd.f32 %v948, %v979
  %v1005 = vadd.f32 %v949, %v979
  %v1006 = vadd.f32 %v950, %v984
  %v1007 = vadd.f32 %v951, %v984
  %v1008 = vadd.f32 %v952, %v989
  %v1009 = vadd.f32 %v953, %v989
  %v1010 = vadd.f32 %v954, %v994
  %v1011 = vadd.f32 %v955, %v994
  %v1012 = vmul.f32 %v996, 0.5
  %v1013 = vmul.f32 %v997, 0.5
  %v1014 = vmul.f32 %v998, 0.5
  %v1015 = vmul.f32 %v999, 0.5
  %v1016 = vmul.f32 %v1000, 0.5
  %v1017 = vmul.f32 %v1001, 0.5
  %v1018 = vmul.f32 %v1002, 0.5
  %v1019 = vmul.f32 %v1003, 0.5
  %v1020 = vmul.f32 %v1004, 0.5
  %v1021 = vmul.f32 %v1005, 0.5
  %v1022 = vmul.f32 %v1006, 0.5
  %v1023 = vmul.f32 %v1007, 0.5
  %v1024 = vmul.f32 %v1008, 0.5
  %v1025 = vmul.f32 %v1009, 0.5
  %v1026 = vmul.f32 %v1010, 0.5
  %v1027 = vmul.f32 %v1011, 0.5
  %v1028 = vmul.f32 %v996, %v996
  %v1029 = vmul.f32 %v997, %v997
  %v1030 = vmul.f32 %v998, %v998
  %v1031 = vmul.f32 %v999, %v999
  %v1032 = vmul.f32 %v1000, %v1000
  %v1033 = vmul.f32 %v1001, %v1001
  %v1034 = vmul.f32 %v1002, %v1002
  %v1035 = vmul.f32 %v1003, %v1003
  %v1036 = vmul.f32 %v1004, %v1004
  %v1037 = vmul.f32 %v1005, %v1005
  %v1038 = vmul.f32 %v1006, %v1006
  %v1039 = vmul.f32 %v1007, %v1007
  %v1040 = vmul.f32 %v1008, %v1008
  %v1041 = vmul.f32 %v1009, %v1009
  %v1042 = vmul.f32 %v1010, %v1010
  %v1043 = vmul.f32 %v1011, %v1011
  %v1044 = vmul.f32 %v1028, %v996
  %v1045 = vmul.f32 %v1029, %v997
  %v1046 = vmul.f32 %v1030, %v998
  %v1047 = vmul.f32 %v1031, %v999
  %v1048 = vmul.f32 %v1032, %v1000
  %v1049 = vmul.f32 %v1033, %v1001
  %v1050 = vmul.f32 %v1034, %v1002
  %v1051 = vmul.f32 %v1035, %v1003
  %v1052 = vmul.f32 %v1036, %v1004
  %v1053 = vmul.f32 %v1037, %v1005
  %v1054 = vmul.f32 %v1038, %v1006
  %v1055 = vmul.f32 %v1039, %v1007
  %v1056 = vmul.f32 %v1040, %v1008
  %v1057 = vmul.f32 %v1041, %v1009
  %v1058 = vmul.f32 %v1042, %v1010
  %v1059 = vmul.f32 %v1043, %v1011
  %v1060 = vmul.f32 %v1044, 0.044715
  %v1061 = vmul.f32 %v1045, 0.044715
  %v1062 = vmul.f32 %v1046, 0.044715
  %v1063 = vmul.f32 %v1047, 0.044715
  %v1064 = vmul.f32 %v1048, 0.044715
  %v1065 = vmul.f32 %v1049, 0.044715
  %v1066 = vmul.f32 %v1050, 0.044715
  %v1067 = vmul.f32 %v1051, 0.044715
  %v1068 = vmul.f32 %v1052, 0.044715
  %v1069 = vmul.f32 %v1053, 0.044715
  %v1070 = vmul.f32 %v1054, 0.044715
  %v1071 = vmul.f32 %v1055, 0.044715
  %v1072 = vmul.f32 %v1056, 0.044715
  %v1073 = vmul.f32 %v1057, 0.044715
  %v1074 = vmul.f32 %v1058, 0.044715
  %v1075 = vmul.f32 %v1059, 0.044715
  %v1076 = vadd.f32 %v996, %v1060
  %v1077 = vadd.f32 %v997, %v1061
  %v1078 = vadd.f32 %v998, %v1062
  %v1079 = vadd.f32 %v999, %v1063
  %v1080 = vadd.f32 %v1000, %v1064
  %v1081 = vadd.f32 %v1001, %v1065
  %v1082 = vadd.f32 %v1002, %v1066
  %v1083 = vadd.f32 %v1003, %v1067
  %v1084 = vadd.f32 %v1004, %v1068
  %v1085 = vadd.f32 %v1005, %v1069
  %v1086 = vadd.f32 %v1006, %v1070
  %v1087 = vadd.f32 %v1007, %v1071
  %v1088 = vadd.f32 %v1008, %v1072
  %v1089 = vadd.f32 %v1009, %v1073
  %v1090 = vadd.f32 %v1010, %v1074
  %v1091 = vadd.f32 %v1011, %v1075
  %v1092 = vmul.f32 %v1076, 0.7978846
  %v1093 = vmul.f32 %v1077, 0.7978846
  %v1094 = vmul.f32 %v1078, 0.7978846
  %v1095 = vmul.f32 %v1079, 0.7978846
  %v1096 = vmul.f32 %v1080, 0.7978846
  %v1097 = vmul.f32 %v1081, 0.7978846
  %v1098 = vmul.f32 %v1082, 0.7978846
  %v1099 = vmul.f32 %v1083, 0.7978846
  %v1100 = vmul.f32 %v1084, 0.7978846
  %v1101 = vmul.f32 %v1085, 0.7978846
  %v1102 = vmul.f32 %v1086, 0.7978846
  %v1103 = vmul.f32 %v1087, 0.7978846
  %v1104 = vmul.f32 %v1088, 0.7978846
  %v1105 = vmul.f32 %v1089, 0.7978846
  %v1106 = vmul.f32 %v1090, 0.7978846
  %v1107 = vmul.f32 %v1091, 0.7978846
  %v1108 = vtanh.pop %v1092
  %v1109 = vtanh.pop %v1093
  %v1110 = vtanh.pop %v1094
  %v1111 = vtanh.pop %v1095
  %v1112 = vtanh.pop %v1096
  %v1113 = vtanh.pop %v1097
  %v1114 = vtanh.pop %v1098
  %v1115 = vtanh.pop %v1099
  %v1116 = vtanh.pop %v1100
  %v1117 = vtanh.pop %v1101
  %v1118 = vtanh.pop %v1102
  %v1119 = vtanh.pop %v1103
  %v1120 = vtanh.pop %v1104
  %v1121 = vtanh.pop %v1105
  %v1122 = vtanh.pop %v1106
  %v1123 = vtanh.pop %v1107
  %v1124 = vadd.f32 %v1108, 1.0
  %v1125 = vadd.f32 %v1109, 1.0
  %v1126 = vadd.f32 %v1110, 1.0
  %v1127 = vadd.f32 %v1111, 1.0
  %v1128 = vadd.f32 %v1112, 1.0
  %v1129 = vadd.f32 %v1113, 1.0
  %v1130 = vadd.f32 %v1114, 1.0
  %v1131 = vadd.f32 %v1115, 1.0
  %v1132 = vadd.f32 %v1116, 1.0
  %v1133 = vadd.f32 %v1117, 1.0
  %v1134 = vadd.f32 %v1118, 1.0
  %v1135 = vadd.f32 %v1119, 1.0
  %v1136 = vadd.f32 %v1120, 1.0
  %v1137 = vadd.f32 %v1121, 1.0
  %v1138 = vadd.f32 %v1122, 1.0
  %v1139 = vadd.f32 %v1123, 1.0
  %v1140 = vmul.f32 %v1012, %v1124
  %v1141 = vmul.f32 %v1013, %v1125
  %v1142 = vmul.f32 %v1014, %v1126
  %v1143 = vmul.f32 %v1015, %v1127
  %v1144 = vmul.f32 %v1016, %v1128
  %v1145 = vmul.f32 %v1017, %v1129
  %v1146 = vmul.f32 %v1018, %v1130
  %v1147 = vmul.f32 %v1019, %v1131
  %v1148 = vmul.f32 %v1020, %v1132
  %v1149 = vmul.f32 %v1021, %v1133
  %v1150 = vmul.f32 %v1022, %v1134
  %v1151 = vmul.f32 %v1023, %v1135
  %v1152 = vmul.f32 %v1024, %v1136
  %v1153 = vmul.f32 %v1025, %v1137
  %v1154 = vmul.f32 %v1026, %v1138
  %v1155 = vmul.f32 %v1027, %v1139
  %v1156 = vadd.f32 %v590, %v1140
  %v1157 = vadd.f32 %v591, %v1141
  %v1158 = vadd.f32 %v592, %v1142
  %v1159 = vadd.f32 %v593, %v1143
  %v1160 = vadd.f32 %v594, %v1144
  %v1161 = vadd.f32 %v595, %v1145
  %v1162 = vadd.f32 %v596, %v1146
  %v1163 = vadd.f32 %v597, %v1147
  %v1164 = vadd.f32 %v598, %v1148
  %v1165 = vadd.f32 %v599, %v1149
  %v1166 = vadd.f32 %v600, %v1150
  %v1167 = vadd.f32 %v601, %v1151
  %v1168 = vadd.f32 %v602, %v1152
  %v1169 = vadd.f32 %v603, %v1153
  %v1170 = vadd.f32 %v604, %v1154
  %v1171 = vadd.f32 %v605, %v1155
  %s1172 = scalar_lea.vmem %s5, 32
  %v1173 = vld [vmem:[%s1172] sm:$0xf]
  %v1174 = vld [vmem:[%s1172 + $0x4] sm:$0xf]
  %v1175 = vld [vmem:[%s1172 + $0x8] sm:$0xf]
  %v1176 = vld [vmem:[%s1172 + $0xc] sm:$0xf]
  %v1177 = vld [vmem:[%s1172 + $0x10] sm:$0xf]
  %v1178 = vld [vmem:[%s1172 + $0x14] sm:$0xf]
  %v1179 = vld [vmem:[%s1172 + $0x18] sm:$0xf]
  %v1180 = vld [vmem:[%s1172 + $0x1c] sm:$0xf]
  %v1181 = vpack.c.bf16 %v1158, %v1156
  %v1182 = vpack.c.bf16 %v1159, %v1157
  %v1183 = vpack.c.bf16 %v1162, %v1160
  %v1184 = vpack.c.bf16 %v1163, %v1161
  %v1185 = vpack.c.bf16 %v1166, %v1164
  %v1186 = vpack.c.bf16 %v1167, %v1165
  %v1187 = vpack.c.bf16 %v1170, %v1168
  %v1188 = vpack.c.bf16 %v1171, %v1169
  %s1189 = scalar_lea.vmem %s6, 64
  %v1190 = vld [vmem:[%s1189] sm:$0xff]
  %v1191 = vld [vmem:[%s1189 + $0x8] sm:$0xff]
  %v1192 = vld [vmem:[%s1189 + $0x10] sm:$0xff]
  %v1193 = vld [vmem:[%s1189 + $0x18] sm:$0xff]
  %v1194 = vld [vmem:[%s1189 + $0x20] sm:$0xff]
  %v1195 = vld [vmem:[%s1189 + $0x28] sm:$0xff]
  %v1196 = vld [vmem:[%s1189 + $0x30] sm:$0xff]
  %v1197 = vld [vmem:[%s1189 + $0x38] sm:$0xff]
  %1199 = vset.pattern.permute.xlu0 0
  %1200 = vperm.xlu0 %1199, %v1190
  %v1201 = vpop.permute.xlu0 %1200
  %1204 = vset.pattern.permute.xlu0 0
  %1205 = vperm.xlu0 %1204, %v1191
  %v1206 = vpop.permute.xlu0 %1205
  %1209 = vset.pattern.permute.xlu0 0
  %1210 = vperm.xlu0 %1209, %v1192
  %v1211 = vpop.permute.xlu0 %1210
  %1214 = vset.pattern.permute.xlu0 0
  %1215 = vperm.xlu0 %1214, %v1193
  %v1216 = vpop.permute.xlu0 %1215
  %1219 = vset.pattern.permute.xlu0 0
  %1220 = vperm.xlu0 %1219, %v1194
  %v1221 = vpop.permute.xlu0 %1220
  %1224 = vset.pattern.permute.xlu0 0
  %1225 = vperm.xlu0 %1224, %v1195
  %v1226 = vpop.permute.xlu0 %1225
  %1229 = vset.pattern.permute.xlu0 0
  %1230 = vperm.xlu0 %1229, %v1196
  %v1231 = vpop.permute.xlu0 %1230
  %1234 = vset.pattern.permute.xlu0 0
  %1235 = vperm.xlu0 %1234, %v1197
  %v1236 = vpop.permute.xlu0 %1235
  %v1246 = vunpack.c.l.b16 %v1173
  %v1247 = vunpack.c.l.b16 %v1174
  %v1248 = vunpack.c.l.b16 %v1175
  %v1249 = vunpack.c.l.b16 %v1176
  %v1250 = vunpack.c.l.b16 %v1177
  %v1251 = vunpack.c.l.b16 %v1178
  %v1252 = vunpack.c.l.b16 %v1179
  %v1253 = vunpack.c.l.b16 %v1180
  %v1254 = vpack.c.b16 %v1247, %v1246
  %v1255 = vpack.c.b16 %v1249, %v1248
  %v1256 = vpack.c.b16 %v1251, %v1250
  %v1257 = vpack.c.b16 %v1253, %v1252
  %v1259 = vsel %vm690, %v1254, 0
  %v1262 = vsel %vm690, %v1255, 0
  %v1265 = vsel %vm690, %v1256, 0
  %v1268 = vsel %vm690, %v1257, 0
  %1270 = vmatprep.subr.bf16.mxu0 0
  %1271 = vmatpush1.bf16.msra.mxu0 0
  %1272 = vmatprep.subr.bf16.mxu0 0
  %1273 = vmatpush1.bf16.msra.mxu0 0
  %1274 = vmatprep.subr.bf16.mxu0 0
  %1275 = vmatpush1.bf16.msra.mxu0 0
  %1276 = vmatprep.subr.bf16.mxu0 0
  %1277 = vmatpush1.bf16.msra.mxu0 0
  %1278 = vmatprep.subr.bf16.mxu0 %v1188
  %1279 = vmatpush1.bf16.msra.mxu0 %v1187
  %1280 = vmatprep.subr.bf16.mxu0 %v1186
  %1281 = vmatpush1.bf16.msra.mxu0 %v1185
  %1282 = vmatprep.subr.bf16.mxu0 %v1184
  %1283 = vmatpush1.bf16.msra.mxu0 %v1183
  %1284 = vmatprep.subr.bf16.mxu0 %v1182
  %1285 = vmatpush1.bf16.msra.mxu0 %v1181
  %1286 = vmatprep.subr.bf16.mxu0 0
  %1287 = vmatpush2.bf16.msra.mxu0 0
  %1288 = vmatprep.subr.bf16.mxu0 0
  %1289 = vmatpush2.bf16.msra.mxu0 0
  %1290 = vmatprep.subr.bf16.mxu0 0
  %1291 = vmatpush2.bf16.msra.mxu0 0
  %1292 = vmatprep.subr.bf16.mxu0 0
  %1293 = vmatpush2.bf16.msra.mxu0 0
  %1294 = vmatprep.subr.bf16.mxu0 0
  %1295 = vmatpush2.bf16.msra.mxu0 0
  %1296 = vmatprep.subr.bf16.mxu0 0
  %1297 = vmatpush2.bf16.msra.mxu0 0
  %1298 = vmatprep.subr.bf16.mxu0 0
  %1299 = vmatpush2.bf16.msra.mxu0 0
  %1300 = vmatprep.subr.bf16.mxu0 0
  %1301 = vmatpush2.bf16.msra.mxu0 0
  %1302 = vmatprep.mubr.bf16.mxu0 0
  %1303 = vmatmul.mubr.bf16.gmra.mxu0 %v1259
  %v1304 = vpop.f32.mrf.mxu0
  %v1305 = vadd.f32 %v1201, %v1304
  %v1306 = vpop.f32.mrf.mxu0
  %v1307 = vadd.f32 %v1201, %v1306
  %v1308 = vpop.f32.mrf.mxu0
  %v1309 = vadd.f32 %v1206, %v1308
  %v1310 = vpop.f32.mrf.mxu0
  %v1311 = vadd.f32 %v1206, %v1310
  %1312 = vmatprep.mubr.bf16.mxu0 0
  %1313 = vmatmul.mubr.bf16.gmra.mxu0 %v1262
  %v1314 = vpop.f32.mrf.mxu0
  %v1315 = vadd.f32 %v1211, %v1314
  %v1316 = vpop.f32.mrf.mxu0
  %v1317 = vadd.f32 %v1211, %v1316
  %v1318 = vpop.f32.mrf.mxu0
  %v1319 = vadd.f32 %v1216, %v1318
  %v1320 = vpop.f32.mrf.mxu0
  %v1321 = vadd.f32 %v1216, %v1320
  %1322 = vmatprep.mubr.bf16.mxu0 0
  %1323 = vmatmul.mubr.bf16.gmra.mxu0 %v1265
  %v1324 = vpop.f32.mrf.mxu0
  %v1325 = vadd.f32 %v1221, %v1324
  %v1326 = vpop.f32.mrf.mxu0
  %v1327 = vadd.f32 %v1221, %v1326
  %v1328 = vpop.f32.mrf.mxu0
  %v1329 = vadd.f32 %v1226, %v1328
  %v1330 = vpop.f32.mrf.mxu0
  %v1331 = vadd.f32 %v1226, %v1330
  %1332 = vmatprep.mubr.bf16.mxu0 0
  %1333 = vmatmul.mubr.bf16.gmra.mxu0 %v1268
  %v1334 = vpop.f32.mrf.mxu0
  %v1335 = vadd.f32 %v1231, %v1334
  %v1336 = vpop.f32.mrf.mxu0
  %v1337 = vadd.f32 %v1231, %v1336
  %v1338 = vpop.f32.mrf.mxu0
  %v1339 = vadd.f32 %v1236, %v1338
  %v1340 = vpop.f32.mrf.mxu0
  %v1341 = vadd.f32 %v1236, %v1340
  %1342 = vdwg.mxu0
  %s1343 = scalar_lea.vmem %s7, 64
  %v1344 = vld [vmem:[%s1343] sm:$0xff]
  %v1345 = vld [vmem:[%s1343 + $0x8] sm:$0xff]
  %v1346 = vld [vmem:[%s1343 + $0x10] sm:$0xff]
  %v1347 = vld [vmem:[%s1343 + $0x18] sm:$0xff]
  %v1348 = vld [vmem:[%s1343 + $0x20] sm:$0xff]
  %v1349 = vld [vmem:[%s1343 + $0x28] sm:$0xff]
  %v1350 = vld [vmem:[%s1343 + $0x30] sm:$0xff]
  %v1351 = vld [vmem:[%s1343 + $0x38] sm:$0xff]
  %s1352 = scalar_lea.vmem %s8, 64
  %v1353 = vld [vmem:[%s1352] sm:$0xff]
  %v1354 = vld [vmem:[%s1352 + $0x8] sm:$0xff]
  %v1355 = vld [vmem:[%s1352 + $0x10] sm:$0xff]
  %v1356 = vld [vmem:[%s1352 + $0x18] sm:$0xff]
  %v1357 = vld [vmem:[%s1352 + $0x20] sm:$0xff]
  %v1358 = vld [vmem:[%s1352 + $0x28] sm:$0xff]
  %v1359 = vld [vmem:[%s1352 + $0x30] sm:$0xff]
  %v1360 = vld [vmem:[%s1352 + $0x38] sm:$0xff]
  %v1361 = vadd.f32 %v1305, %v1309
  %v1362 = vadd.f32 %v1361, %v1315
  %v1363 = vadd.f32 %v1362, %v1319
  %v1364 = vadd.f32 %v1363, %v1325
  %v1365 = vadd.f32 %v1364, %v1329
  %v1366 = vadd.f32 %v1365, %v1335
  %v1367 = vadd.f32 %v1366, %v1339
  %v1368 = vrot.slane %v1367, 4
  %v1369 = vadd.f32 %v1367, %v1368
  %v1370 = vrot.slane %v1369, 2
  %v1371 = vadd.f32 %v1369, %v1370
  %v1372 = vrot.slane %v1371, 1
  %v1373 = vadd.f32 %v1371, %v1372
  %v1374 = vadd.f32 %v1307, %v1311
  %v1375 = vadd.f32 %v1374, %v1317
  %v1376 = vadd.f32 %v1375, %v1321
  %v1377 = vadd.f32 %v1376, %v1327
  %v1378 = vadd.f32 %v1377, %v1331
  %v1379 = vadd.f32 %v1378, %v1337
  %v1380 = vadd.f32 %v1379, %v1341
  %v1381 = vrot.slane %v1380, 4
  %v1382 = vadd.f32 %v1380, %v1381
  %v1383 = vrot.slane %v1382, 2
  %v1384 = vadd.f32 %v1382, %v1383
  %v1385 = vrot.slane %v1384, 1
  %v1386 = vadd.f32 %v1384, %v1385
  %v1387 = vmul.f32 %v1373, %v267
  %v1388 = vmul.f32 %v1386, %v267
  %v1389 = vsub.f32 %v1305, %v1387
  %v1390 = vsub.f32 %v1307, %v1388
  %v1391 = vsub.f32 %v1309, %v1387
  %v1392 = vsub.f32 %v1311, %v1388
  %v1393 = vsub.f32 %v1315, %v1387
  %v1394 = vsub.f32 %v1317, %v1388
  %v1395 = vsub.f32 %v1319, %v1387
  %v1396 = vsub.f32 %v1321, %v1388
  %v1397 = vsub.f32 %v1325, %v1387
  %v1398 = vsub.f32 %v1327, %v1388
  %v1399 = vsub.f32 %v1329, %v1387
  %v1400 = vsub.f32 %v1331, %v1388
  %v1401 = vsub.f32 %v1335, %v1387
  %v1402 = vsub.f32 %v1337, %v1388
  %v1403 = vsub.f32 %v1339, %v1387
  %v1404 = vsub.f32 %v1341, %v1388
  %v1405 = vmul.f32 %v1389, %v1389
  %v1406 = vmul.f32 %v1390, %v1390
  %v1407 = vmul.f32 %v1391, %v1391
  %v1408 = vmul.f32 %v1392, %v1392
  %v1409 = vmul.f32 %v1393, %v1393
  %v1410 = vmul.f32 %v1394, %v1394
  %v1411 = vmul.f32 %v1395, %v1395
  %v1412 = vmul.f32 %v1396, %v1396
  %v1413 = vmul.f32 %v1397, %v1397
  %v1414 = vmul.f32 %v1398, %v1398
  %v1415 = vmul.f32 %v1399, %v1399
  %v1416 = vmul.f32 %v1400, %v1400
  %v1417 = vmul.f32 %v1401, %v1401
  %v1418 = vmul.f32 %v1402, %v1402
  %v1419 = vmul.f32 %v1403, %v1403
  %v1420 = vmul.f32 %v1404, %v1404
  %v1421 = vadd.f32 %v1405, %v1407
  %v1422 = vadd.f32 %v1421, %v1409
  %v1423 = vadd.f32 %v1422, %v1411
  %v1424 = vadd.f32 %v1423, %v1413
  %v1425 = vadd.f32 %v1424, %v1415
  %v1426 = vadd.f32 %v1425, %v1417
  %v1427 = vadd.f32 %v1426, %v1419
  %v1428 = vrot.slane %v1427, 4
  %v1429 = vadd.f32 %v1427, %v1428
  %v1430 = vrot.slane %v1429, 2
  %v1431 = vadd.f32 %v1429, %v1430
  %v1432 = vrot.slane %v1431, 1
  %v1433 = vadd.f32 %v1431, %v1432
  %v1434 = vadd.f32 %v1406, %v1408
  %v1435 = vadd.f32 %v1434, %v1410
  %v1436 = vadd.f32 %v1435, %v1412
  %v1437 = vadd.f32 %v1436, %v1414
  %v1438 = vadd.f32 %v1437, %v1416
  %v1439 = vadd.f32 %v1438, %v1418
  %v1440 = vadd.f32 %v1439, %v1420
  %v1441 = vrot.slane %v1440, 4
  %v1442 = vadd.f32 %v1440, %v1441
  %v1443 = vrot.slane %v1442, 2
  %v1444 = vadd.f32 %v1442, %v1443
  %v1445 = vrot.slane %v1444, 1
  %v1446 = vadd.f32 %v1444, %v1445
  %v1447 = vmul.f32 %v1433, %v267
  %v1448 = vmul.f32 %v1446, %v267
  %v1449 = vadd.f32 %v1447, 1e-05
  %v1450 = vadd.f32 %v1448, 1e-05
  %v1451 = vrsqrt.pop %v1449
  %v1452 = vrsqrt.pop %v1450
  %v1453 = vmul.f32 %v1389, %v1451
  %v1454 = vmul.f32 %v1390, %v1452
  %v1455 = vmul.f32 %v1391, %v1451
  %v1456 = vmul.f32 %v1392, %v1452
  %v1457 = vmul.f32 %v1393, %v1451
  %v1458 = vmul.f32 %v1394, %v1452
  %v1459 = vmul.f32 %v1395, %v1451
  %v1460 = vmul.f32 %v1396, %v1452
  %v1461 = vmul.f32 %v1397, %v1451
  %v1462 = vmul.f32 %v1398, %v1452
  %v1463 = vmul.f32 %v1399, %v1451
  %v1464 = vmul.f32 %v1400, %v1452
  %v1465 = vmul.f32 %v1401, %v1451
  %v1466 = vmul.f32 %v1402, %v1452
  %v1467 = vmul.f32 %v1403, %v1451
  %v1468 = vmul.f32 %v1404, %v1452
  %1470 = vset.pattern.permute.xlu0 0
  %1471 = vperm.xlu0 %1470, %v1344
  %v1472 = vpop.permute.xlu0 %1471
  %1475 = vset.pattern.permute.xlu0 0
  %1476 = vperm.xlu0 %1475, %v1345
  %v1477 = vpop.permute.xlu0 %1476
  %1480 = vset.pattern.permute.xlu0 0
  %1481 = vperm.xlu0 %1480, %v1346
  %v1482 = vpop.permute.xlu0 %1481
  %1485 = vset.pattern.permute.xlu0 0
  %1486 = vperm.xlu0 %1485, %v1347
  %v1487 = vpop.permute.xlu0 %1486
  %1490 = vset.pattern.permute.xlu0 0
  %1491 = vperm.xlu0 %1490, %v1348
  %v1492 = vpop.permute.xlu0 %1491
  %1495 = vset.pattern.permute.xlu0 0
  %1496 = vperm.xlu0 %1495, %v1349
  %v1497 = vpop.permute.xlu0 %1496
  %1500 = vset.pattern.permute.xlu0 0
  %1501 = vperm.xlu0 %1500, %v1350
  %v1502 = vpop.permute.xlu0 %1501
  %1505 = vset.pattern.permute.xlu0 0
  %1506 = vperm.xlu0 %1505, %v1351
  %v1507 = vpop.permute.xlu0 %1506
  %v1509 = vmul.f32 %v1453, %v1472
  %v1510 = vmul.f32 %v1454, %v1472
  %v1511 = vmul.f32 %v1455, %v1477
  %v1512 = vmul.f32 %v1456, %v1477
  %v1513 = vmul.f32 %v1457, %v1482
  %v1514 = vmul.f32 %v1458, %v1482
  %v1515 = vmul.f32 %v1459, %v1487
  %v1516 = vmul.f32 %v1460, %v1487
  %v1517 = vmul.f32 %v1461, %v1492
  %v1518 = vmul.f32 %v1462, %v1492
  %v1519 = vmul.f32 %v1463, %v1497
  %v1520 = vmul.f32 %v1464, %v1497
  %v1521 = vmul.f32 %v1465, %v1502
  %v1522 = vmul.f32 %v1466, %v1502
  %v1523 = vmul.f32 %v1467, %v1507
  %v1524 = vmul.f32 %v1468, %v1507
  %1526 = vset.pattern.permute.xlu0 0
  %1527 = vperm.xlu0 %1526, %v1353
  %v1528 = vpop.permute.xlu0 %1527
  %1531 = vset.pattern.permute.xlu0 0
  %1532 = vperm.xlu0 %1531, %v1354
  %v1533 = vpop.permute.xlu0 %1532
  %1536 = vset.pattern.permute.xlu0 0
  %1537 = vperm.xlu0 %1536, %v1355
  %v1538 = vpop.permute.xlu0 %1537
  %1541 = vset.pattern.permute.xlu0 0
  %1542 = vperm.xlu0 %1541, %v1356
  %v1543 = vpop.permute.xlu0 %1542
  %1546 = vset.pattern.permute.xlu0 0
  %1547 = vperm.xlu0 %1546, %v1357
  %v1548 = vpop.permute.xlu0 %1547
  %1551 = vset.pattern.permute.xlu0 0
  %1552 = vperm.xlu0 %1551, %v1358
  %v1553 = vpop.permute.xlu0 %1552
  %1556 = vset.pattern.permute.xlu0 0
  %1557 = vperm.xlu0 %1556, %v1359
  %v1558 = vpop.permute.xlu0 %1557
  %1561 = vset.pattern.permute.xlu0 0
  %1562 = vperm.xlu0 %1561, %v1360
  %v1563 = vpop.permute.xlu0 %1562
  %v1565 = vadd.f32 %v1509, %v1528
  %v1566 = vadd.f32 %v1510, %v1528
  %v1567 = vadd.f32 %v1511, %v1533
  %v1568 = vadd.f32 %v1512, %v1533
  %v1569 = vadd.f32 %v1513, %v1538
  %v1570 = vadd.f32 %v1514, %v1538
  %v1571 = vadd.f32 %v1515, %v1543
  %v1572 = vadd.f32 %v1516, %v1543
  %v1573 = vadd.f32 %v1517, %v1548
  %v1574 = vadd.f32 %v1518, %v1548
  %v1575 = vadd.f32 %v1519, %v1553
  %v1576 = vadd.f32 %v1520, %v1553
  %v1577 = vadd.f32 %v1521, %v1558
  %v1578 = vadd.f32 %v1522, %v1558
  %v1579 = vadd.f32 %v1523, %v1563
  %v1580 = vadd.f32 %v1524, %v1563
  %v1581 = vmul.f32 %v1565, 0.5
  %v1582 = vmul.f32 %v1566, 0.5
  %v1583 = vmul.f32 %v1567, 0.5
  %v1584 = vmul.f32 %v1568, 0.5
  %v1585 = vmul.f32 %v1569, 0.5
  %v1586 = vmul.f32 %v1570, 0.5
  %v1587 = vmul.f32 %v1571, 0.5
  %v1588 = vmul.f32 %v1572, 0.5
  %v1589 = vmul.f32 %v1573, 0.5
  %v1590 = vmul.f32 %v1574, 0.5
  %v1591 = vmul.f32 %v1575, 0.5
  %v1592 = vmul.f32 %v1576, 0.5
  %v1593 = vmul.f32 %v1577, 0.5
  %v1594 = vmul.f32 %v1578, 0.5
  %v1595 = vmul.f32 %v1579, 0.5
  %v1596 = vmul.f32 %v1580, 0.5
  %v1597 = vmul.f32 %v1565, %v1565
  %v1598 = vmul.f32 %v1566, %v1566
  %v1599 = vmul.f32 %v1567, %v1567
  %v1600 = vmul.f32 %v1568, %v1568
  %v1601 = vmul.f32 %v1569, %v1569
  %v1602 = vmul.f32 %v1570, %v1570
  %v1603 = vmul.f32 %v1571, %v1571
  %v1604 = vmul.f32 %v1572, %v1572
  %v1605 = vmul.f32 %v1573, %v1573
  %v1606 = vmul.f32 %v1574, %v1574
  %v1607 = vmul.f32 %v1575, %v1575
  %v1608 = vmul.f32 %v1576, %v1576
  %v1609 = vmul.f32 %v1577, %v1577
  %v1610 = vmul.f32 %v1578, %v1578
  %v1611 = vmul.f32 %v1579, %v1579
  %v1612 = vmul.f32 %v1580, %v1580
  %v1613 = vmul.f32 %v1597, %v1565
  %v1614 = vmul.f32 %v1598, %v1566
  %v1615 = vmul.f32 %v1599, %v1567
  %v1616 = vmul.f32 %v1600, %v1568
  %v1617 = vmul.f32 %v1601, %v1569
  %v1618 = vmul.f32 %v1602, %v1570
  %v1619 = vmul.f32 %v1603, %v1571
  %v1620 = vmul.f32 %v1604, %v1572
  %v1621 = vmul.f32 %v1605, %v1573
  %v1622 = vmul.f32 %v1606, %v1574
  %v1623 = vmul.f32 %v1607, %v1575
  %v1624 = vmul.f32 %v1608, %v1576
  %v1625 = vmul.f32 %v1609, %v1577
  %v1626 = vmul.f32 %v1610, %v1578
  %v1627 = vmul.f32 %v1611, %v1579
  %v1628 = vmul.f32 %v1612, %v1580
  %v1629 = vmul.f32 %v1613, 0.044715
  %v1630 = vmul.f32 %v1614, 0.044715
  %v1631 = vmul.f32 %v1615, 0.044715
  %v1632 = vmul.f32 %v1616, 0.044715
  %v1633 = vmul.f32 %v1617, 0.044715
  %v1634 = vmul.f32 %v1618, 0.044715
  %v1635 = vmul.f32 %v1619, 0.044715
  %v1636 = vmul.f32 %v1620, 0.044715
  %v1637 = vmul.f32 %v1621, 0.044715
  %v1638 = vmul.f32 %v1622, 0.044715
  %v1639 = vmul.f32 %v1623, 0.044715
  %v1640 = vmul.f32 %v1624, 0.044715
  %v1641 = vmul.f32 %v1625, 0.044715
  %v1642 = vmul.f32 %v1626, 0.044715
  %v1643 = vmul.f32 %v1627, 0.044715
  %v1644 = vmul.f32 %v1628, 0.044715
  %v1645 = vadd.f32 %v1565, %v1629
  %v1646 = vadd.f32 %v1566, %v1630
  %v1647 = vadd.f32 %v1567, %v1631
  %v1648 = vadd.f32 %v1568, %v1632
  %v1649 = vadd.f32 %v1569, %v1633
  %v1650 = vadd.f32 %v1570, %v1634
  %v1651 = vadd.f32 %v1571, %v1635
  %v1652 = vadd.f32 %v1572, %v1636
  %v1653 = vadd.f32 %v1573, %v1637
  %v1654 = vadd.f32 %v1574, %v1638
  %v1655 = vadd.f32 %v1575, %v1639
  %v1656 = vadd.f32 %v1576, %v1640
  %v1657 = vadd.f32 %v1577, %v1641
  %v1658 = vadd.f32 %v1578, %v1642
  %v1659 = vadd.f32 %v1579, %v1643
  %v1660 = vadd.f32 %v1580, %v1644
  %v1661 = vmul.f32 %v1645, 0.7978846
  %v1662 = vmul.f32 %v1646, 0.7978846
  %v1663 = vmul.f32 %v1647, 0.7978846
  %v1664 = vmul.f32 %v1648, 0.7978846
  %v1665 = vmul.f32 %v1649, 0.7978846
  %v1666 = vmul.f32 %v1650, 0.7978846
  %v1667 = vmul.f32 %v1651, 0.7978846
  %v1668 = vmul.f32 %v1652, 0.7978846
  %v1669 = vmul.f32 %v1653, 0.7978846
  %v1670 = vmul.f32 %v1654, 0.7978846
  %v1671 = vmul.f32 %v1655, 0.7978846
  %v1672 = vmul.f32 %v1656, 0.7978846
  %v1673 = vmul.f32 %v1657, 0.7978846
  %v1674 = vmul.f32 %v1658, 0.7978846
  %v1675 = vmul.f32 %v1659, 0.7978846
  %v1676 = vmul.f32 %v1660, 0.7978846
  %v1677 = vtanh.pop %v1661
  %v1678 = vtanh.pop %v1662
  %v1679 = vtanh.pop %v1663
  %v1680 = vtanh.pop %v1664
  %v1681 = vtanh.pop %v1665
  %v1682 = vtanh.pop %v1666
  %v1683 = vtanh.pop %v1667
  %v1684 = vtanh.pop %v1668
  %v1685 = vtanh.pop %v1669
  %v1686 = vtanh.pop %v1670
  %v1687 = vtanh.pop %v1671
  %v1688 = vtanh.pop %v1672
  %v1689 = vtanh.pop %v1673
  %v1690 = vtanh.pop %v1674
  %v1691 = vtanh.pop %v1675
  %v1692 = vtanh.pop %v1676
  %v1693 = vadd.f32 %v1677, 1.0
  %v1694 = vadd.f32 %v1678, 1.0
  %v1695 = vadd.f32 %v1679, 1.0
  %v1696 = vadd.f32 %v1680, 1.0
  %v1697 = vadd.f32 %v1681, 1.0
  %v1698 = vadd.f32 %v1682, 1.0
  %v1699 = vadd.f32 %v1683, 1.0
  %v1700 = vadd.f32 %v1684, 1.0
  %v1701 = vadd.f32 %v1685, 1.0
  %v1702 = vadd.f32 %v1686, 1.0
  %v1703 = vadd.f32 %v1687, 1.0
  %v1704 = vadd.f32 %v1688, 1.0
  %v1705 = vadd.f32 %v1689, 1.0
  %v1706 = vadd.f32 %v1690, 1.0
  %v1707 = vadd.f32 %v1691, 1.0
  %v1708 = vadd.f32 %v1692, 1.0
  %v1709 = vmul.f32 %v1581, %v1693
  %v1710 = vmul.f32 %v1582, %v1694
  %v1711 = vmul.f32 %v1583, %v1695
  %v1712 = vmul.f32 %v1584, %v1696
  %v1713 = vmul.f32 %v1585, %v1697
  %v1714 = vmul.f32 %v1586, %v1698
  %v1715 = vmul.f32 %v1587, %v1699
  %v1716 = vmul.f32 %v1588, %v1700
  %v1717 = vmul.f32 %v1589, %v1701
  %v1718 = vmul.f32 %v1590, %v1702
  %v1719 = vmul.f32 %v1591, %v1703
  %v1720 = vmul.f32 %v1592, %v1704
  %v1721 = vmul.f32 %v1593, %v1705
  %v1722 = vmul.f32 %v1594, %v1706
  %v1723 = vmul.f32 %v1595, %v1707
  %v1724 = vmul.f32 %v1596, %v1708
  %v1725 = vadd.f32 %v1156, %v1709
  %v1726 = vadd.f32 %v1157, %v1710
  %v1727 = vadd.f32 %v1158, %v1711
  %v1728 = vadd.f32 %v1159, %v1712
  %v1729 = vadd.f32 %v1160, %v1713
  %v1730 = vadd.f32 %v1161, %v1714
  %v1731 = vadd.f32 %v1162, %v1715
  %v1732 = vadd.f32 %v1163, %v1716
  %v1733 = vadd.f32 %v1164, %v1717
  %v1734 = vadd.f32 %v1165, %v1718
  %v1735 = vadd.f32 %v1166, %v1719
  %v1736 = vadd.f32 %v1167, %v1720
  %v1737 = vadd.f32 %v1168, %v1721
  %v1738 = vadd.f32 %v1169, %v1722
  %v1739 = vadd.f32 %v1170, %v1723
  %v1740 = vadd.f32 %v1171, %v1724
  %s1741 = scalar_lea.vmem %s5, 64
  %v1742 = vld [vmem:[%s1741] sm:$0xf]
  %v1743 = vld [vmem:[%s1741 + $0x4] sm:$0xf]
  %v1744 = vld [vmem:[%s1741 + $0x8] sm:$0xf]
  %v1745 = vld [vmem:[%s1741 + $0xc] sm:$0xf]
  %v1746 = vld [vmem:[%s1741 + $0x10] sm:$0xf]
  %v1747 = vld [vmem:[%s1741 + $0x14] sm:$0xf]
  %v1748 = vld [vmem:[%s1741 + $0x18] sm:$0xf]
  %v1749 = vld [vmem:[%s1741 + $0x1c] sm:$0xf]
  %v1750 = vpack.c.bf16 %v1727, %v1725
  %v1751 = vpack.c.bf16 %v1728, %v1726
  %v1752 = vpack.c.bf16 %v1731, %v1729
  %v1753 = vpack.c.bf16 %v1732, %v1730
  %v1754 = vpack.c.bf16 %v1735, %v1733
  %v1755 = vpack.c.bf16 %v1736, %v1734
  %v1756 = vpack.c.bf16 %v1739, %v1737
  %v1757 = vpack.c.bf16 %v1740, %v1738
  %s1758 = scalar_lea.vmem %s6, 128
  %v1759 = vld [vmem:[%s1758] sm:$0xff]
  %v1760 = vld [vmem:[%s1758 + $0x8] sm:$0xff]
  %v1761 = vld [vmem:[%s1758 + $0x10] sm:$0xff]
  %v1762 = vld [vmem:[%s1758 + $0x18] sm:$0xff]
  %v1763 = vld [vmem:[%s1758 + $0x20] sm:$0xff]
  %v1764 = vld [vmem:[%s1758 + $0x28] sm:$0xff]
  %v1765 = vld [vmem:[%s1758 + $0x30] sm:$0xff]
  %v1766 = vld [vmem:[%s1758 + $0x38] sm:$0xff]
  %1768 = vset.pattern.permute.xlu0 0
  %1769 = vperm.xlu0 %1768, %v1759
  %v1770 = vpop.permute.xlu0 %1769
  %1773 = vset.pattern.permute.xlu0 0
  %1774 = vperm.xlu0 %1773, %v1760
  %v1775 = vpop.permute.xlu0 %1774
  %1778 = vset.pattern.permute.xlu0 0
  %1779 = vperm.xlu0 %1778, %v1761
  %v1780 = vpop.permute.xlu0 %1779
  %1783 = vset.pattern.permute.xlu0 0
  %1784 = vperm.xlu0 %1783, %v1762
  %v1785 = vpop.permute.xlu0 %1784
  %1788 = vset.pattern.permute.xlu0 0
  %1789 = vperm.xlu0 %1788, %v1763
  %v1790 = vpop.permute.xlu0 %1789
  %1793 = vset.pattern.permute.xlu0 0
  %1794 = vperm.xlu0 %1793, %v1764
  %v1795 = vpop.permute.xlu0 %1794
  %1798 = vset.pattern.permute.xlu0 0
  %1799 = vperm.xlu0 %1798, %v1765
  %v1800 = vpop.permute.xlu0 %1799
  %1803 = vset.pattern.permute.xlu0 0
  %1804 = vperm.xlu0 %1803, %v1766
  %v1805 = vpop.permute.xlu0 %1804
  %v1815 = vunpack.c.l.b16 %v1742
  %v1816 = vunpack.c.l.b16 %v1743
  %v1817 = vunpack.c.l.b16 %v1744
  %v1818 = vunpack.c.l.b16 %v1745
  %v1819 = vunpack.c.l.b16 %v1746
  %v1820 = vunpack.c.l.b16 %v1747
  %v1821 = vunpack.c.l.b16 %v1748
  %v1822 = vunpack.c.l.b16 %v1749
  %v1823 = vpack.c.b16 %v1816, %v1815
  %v1824 = vpack.c.b16 %v1818, %v1817
  %v1825 = vpack.c.b16 %v1820, %v1819
  %v1826 = vpack.c.b16 %v1822, %v1821
  %v1828 = vsel %vm690, %v1823, 0
  %v1831 = vsel %vm690, %v1824, 0
  %v1834 = vsel %vm690, %v1825, 0
  %v1837 = vsel %vm690, %v1826, 0
  %1839 = vmatprep.subr.bf16.mxu0 0
  %1840 = vmatpush1.bf16.msra.mxu0 0
  %1841 = vmatprep.subr.bf16.mxu0 0
  %1842 = vmatpush1.bf16.msra.mxu0 0
  %1843 = vmatprep.subr.bf16.mxu0 0
  %1844 = vmatpush1.bf16.msra.mxu0 0
  %1845 = vmatprep.subr.bf16.mxu0 0
  %1846 = vmatpush1.bf16.msra.mxu0 0
  %1847 = vmatprep.subr.bf16.mxu0 %v1757
  %1848 = vmatpush1.bf16.msra.mxu0 %v1756
  %1849 = vmatprep.subr.bf16.mxu0 %v1755
  %1850 = vmatpush1.bf16.msra.mxu0 %v1754
  %1851 = vmatprep.subr.bf16.mxu0 %v1753
  %1852 = vmatpush1.bf16.msra.mxu0 %v1752
  %1853 = vmatprep.subr.bf16.mxu0 %v1751
  %1854 = vmatpush1.bf16.msra.mxu0 %v1750
  %1855 = vmatprep.subr.bf16.mxu0 0
  %1856 = vmatpush2.bf16.msra.mxu0 0
  %1857 = vmatprep.subr.bf16.mxu0 0
  %1858 = vmatpush2.bf16.msra.mxu0 0
  %1859 = vmatprep.subr.bf16.mxu0 0
  %1860 = vmatpush2.bf16.msra.mxu0 0
  %1861 = vmatprep.subr.bf16.mxu0 0
  %1862 = vmatpush2.bf16.msra.mxu0 0
  %1863 = vmatprep.subr.bf16.mxu0 0
  %1864 = vmatpush2.bf16.msra.mxu0 0
  %1865 = vmatprep.subr.bf16.mxu0 0
  %1866 = vmatpush2.bf16.msra.mxu0 0
  %1867 = vmatprep.subr.bf16.mxu0 0
  %1868 = vmatpush2.bf16.msra.mxu0 0
  %1869 = vmatprep.subr.bf16.mxu0 0
  %1870 = vmatpush2.bf16.msra.mxu0 0
  %1871 = vmatprep.mubr.bf16.mxu0 0
  %1872 = vmatmul.mubr.bf16.gmra.mxu0 %v1828
  %v1873 = vpop.f32.mrf.mxu0
  %v1874 = vadd.f32 %v1770, %v1873
  %v1875 = vpop.f32.mrf.mxu0
  %v1876 = vadd.f32 %v1770, %v1875
  %v1877 = vpop.f32.mrf.mxu0
  %v1878 = vadd.f32 %v1775, %v1877
  %v1879 = vpop.f32.mrf.mxu0
  %v1880 = vadd.f32 %v1775, %v1879
  %1881 = vmatprep.mubr.bf16.mxu0 0
  %1882 = vmatmul.mubr.bf16.gmra.mxu0 %v1831
  %v1883 = vpop.f32.mrf.mxu0
  %v1884 = vadd.f32 %v1780, %v1883
  %v1885 = vpop.f32.mrf.mxu0
  %v1886 = vadd.f32 %v1780, %v1885
  %v1887 = vpop.f32.mrf.mxu0
  %v1888 = vadd.f32 %v1785, %v1887
  %v1889 = vpop.f32.mrf.mxu0
  %v1890 = vadd.f32 %v1785, %v1889
  %1891 = vmatprep.mubr.bf16.mxu0 0
  %1892 = vmatmul.mubr.bf16.gmra.mxu0 %v1834
  %v1893 = vpop.f32.mrf.mxu0
  %v1894 = vadd.f32 %v1790, %v1893
  %v1895 = vpop.f32.mrf.mxu0
  %v1896 = vadd.f32 %v1790, %v1895
  %v1897 = vpop.f32.mrf.mxu0
  %v1898 = vadd.f32 %v1795, %v1897
  %v1899 = vpop.f32.mrf.mxu0
  %v1900 = vadd.f32 %v1795, %v1899
  %1901 = vmatprep.mubr.bf16.mxu0 0
  %1902 = vmatmul.mubr.bf16.gmra.mxu0 %v1837
  %v1903 = vpop.f32.mrf.mxu0
  %v1904 = vadd.f32 %v1800, %v1903
  %v1905 = vpop.f32.mrf.mxu0
  %v1906 = vadd.f32 %v1800, %v1905
  %v1907 = vpop.f32.mrf.mxu0
  %v1908 = vadd.f32 %v1805, %v1907
  %v1909 = vpop.f32.mrf.mxu0
  %v1910 = vadd.f32 %v1805, %v1909
  %1911 = vdwg.mxu0
  %s1912 = scalar_lea.vmem %s7, 128
  %v1913 = vld [vmem:[%s1912] sm:$0xff]
  %v1914 = vld [vmem:[%s1912 + $0x8] sm:$0xff]
  %v1915 = vld [vmem:[%s1912 + $0x10] sm:$0xff]
  %v1916 = vld [vmem:[%s1912 + $0x18] sm:$0xff]
  %v1917 = vld [vmem:[%s1912 + $0x20] sm:$0xff]
  %v1918 = vld [vmem:[%s1912 + $0x28] sm:$0xff]
  %v1919 = vld [vmem:[%s1912 + $0x30] sm:$0xff]
  %v1920 = vld [vmem:[%s1912 + $0x38] sm:$0xff]
  %s1921 = scalar_lea.vmem %s8, 128
  %v1922 = vld [vmem:[%s1921] sm:$0xff]
  %v1923 = vld [vmem:[%s1921 + $0x8] sm:$0xff]
  %v1924 = vld [vmem:[%s1921 + $0x10] sm:$0xff]
  %v1925 = vld [vmem:[%s1921 + $0x18] sm:$0xff]
  %v1926 = vld [vmem:[%s1921 + $0x20] sm:$0xff]
  %v1927 = vld [vmem:[%s1921 + $0x28] sm:$0xff]
  %v1928 = vld [vmem:[%s1921 + $0x30] sm:$0xff]
  %v1929 = vld [vmem:[%s1921 + $0x38] sm:$0xff]
  %v1930 = vadd.f32 %v1874, %v1878
  %v1931 = vadd.f32 %v1930, %v1884
  %v1932 = vadd.f32 %v1931, %v1888
  %v1933 = vadd.f32 %v1932, %v1894
  %v1934 = vadd.f32 %v1933, %v1898
  %v1935 = vadd.f32 %v1934, %v1904
  %v1936 = vadd.f32 %v1935, %v1908
  %v1937 = vrot.slane %v1936, 4
  %v1938 = vadd.f32 %v1936, %v1937
  %v1939 = vrot.slane %v1938, 2
  %v1940 = vadd.f32 %v1938, %v1939
  %v1941 = vrot.slane %v1940, 1
  %v1942 = vadd.f32 %v1940, %v1941
  %v1943 = vadd.f32 %v1876, %v1880
  %v1944 = vadd.f32 %v1943, %v1886
  %v1945 = vadd.f32 %v1944, %v1890
  %v1946 = vadd.f32 %v1945, %v1896
  %v1947 = vadd.f32 %v1946, %v1900
  %v1948 = vadd.f32 %v1947, %v1906
  %v1949 = vadd.f32 %v1948, %v1910
  %v1950 = vrot.slane %v1949, 4
  %v1951 = vadd.f32 %v1949, %v1950
  %v1952 = vrot.slane %v1951, 2
  %v1953 = vadd.f32 %v1951, %v1952
  %v1954 = vrot.slane %v1953, 1
  %v1955 = vadd.f32 %v1953, %v1954
  %v1956 = vmul.f32 %v1942, %v267
  %v1957 = vmul.f32 %v1955, %v267
  %v1958 = vsub.f32 %v1874, %v1956
  %v1959 = vsub.f32 %v1876, %v1957
  %v1960 = vsub.f32 %v1878, %v1956
  %v1961 = vsub.f32 %v1880, %v1957
  %v1962 = vsub.f32 %v1884, %v1956
  %v1963 = vsub.f32 %v1886, %v1957
  %v1964 = vsub.f32 %v1888, %v1956
  %v1965 = vsub.f32 %v1890, %v1957
  %v1966 = vsub.f32 %v1894, %v1956
  %v1967 = vsub.f32 %v1896, %v1957
  %v1968 = vsub.f32 %v1898, %v1956
  %v1969 = vsub.f32 %v1900, %v1957
  %v1970 = vsub.f32 %v1904, %v1956
  %v1971 = vsub.f32 %v1906, %v1957
  %v1972 = vsub.f32 %v1908, %v1956
  %v1973 = vsub.f32 %v1910, %v1957
  %v1974 = vmul.f32 %v1958, %v1958
  %v1975 = vmul.f32 %v1959, %v1959
  %v1976 = vmul.f32 %v1960, %v1960
  %v1977 = vmul.f32 %v1961, %v1961
  %v1978 = vmul.f32 %v1962, %v1962
  %v1979 = vmul.f32 %v1963, %v1963
  %v1980 = vmul.f32 %v1964, %v1964
  %v1981 = vmul.f32 %v1965, %v1965
  %v1982 = vmul.f32 %v1966, %v1966
  %v1983 = vmul.f32 %v1967, %v1967
  %v1984 = vmul.f32 %v1968, %v1968
  %v1985 = vmul.f32 %v1969, %v1969
  %v1986 = vmul.f32 %v1970, %v1970
  %v1987 = vmul.f32 %v1971, %v1971
  %v1988 = vmul.f32 %v1972, %v1972
  %v1989 = vmul.f32 %v1973, %v1973
  %v1990 = vadd.f32 %v1974, %v1976
  %v1991 = vadd.f32 %v1990, %v1978
  %v1992 = vadd.f32 %v1991, %v1980
  %v1993 = vadd.f32 %v1992, %v1982
  %v1994 = vadd.f32 %v1993, %v1984
  %v1995 = vadd.f32 %v1994, %v1986
  %v1996 = vadd.f32 %v1995, %v1988
  %v1997 = vrot.slane %v1996, 4
  %v1998 = vadd.f32 %v1996, %v1997
  %v1999 = vrot.slane %v1998, 2
  %v2000 = vadd.f32 %v1998, %v1999
  %v2001 = vrot.slane %v2000, 1
  %v2002 = vadd.f32 %v2000, %v2001
  %v2003 = vadd.f32 %v1975, %v1977
  %v2004 = vadd.f32 %v2003, %v1979
  %v2005 = vadd.f32 %v2004, %v1981
  %v2006 = vadd.f32 %v2005, %v1983
  %v2007 = vadd.f32 %v2006, %v1985
  %v2008 = vadd.f32 %v2007, %v1987
  %v2009 = vadd.f32 %v2008, %v1989
  %v2010 = vrot.slane %v2009, 4
  %v2011 = vadd.f32 %v2009, %v2010
  %v2012 = vrot.slane %v2011, 2
  %v2013 = vadd.f32 %v2011, %v2012
  %v2014 = vrot.slane %v2013, 1
  %v2015 = vadd.f32 %v2013, %v2014
  %v2016 = vmul.f32 %v2002, %v267
  %v2017 = vmul.f32 %v2015, %v267
  %v2018 = vadd.f32 %v2016, 1e-05
  %v2019 = vadd.f32 %v2017, 1e-05
  %v2020 = vrsqrt.pop %v2018
  %v2021 = vrsqrt.pop %v2019
  %v2022 = vmul.f32 %v1958, %v2020
  %v2023 = vmul.f32 %v1959, %v2021
  %v2024 = vmul.f32 %v1960, %v2020
  %v2025 = vmul.f32 %v1961, %v2021
  %v2026 = vmul.f32 %v1962, %v2020
  %v2027 = vmul.f32 %v1963, %v2021
  %v2028 = vmul.f32 %v1964, %v2020
  %v2029 = vmul.f32 %v1965, %v2021
  %v2030 = vmul.f32 %v1966, %v2020
  %v2031 = vmul.f32 %v1967, %v2021
  %v2032 = vmul.f32 %v1968, %v2020
  %v2033 = vmul.f32 %v1969, %v2021
  %v2034 = vmul.f32 %v1970, %v2020
  %v2035 = vmul.f32 %v1971, %v2021
  %v2036 = vmul.f32 %v1972, %v2020
  %v2037 = vmul.f32 %v1973, %v2021
  %2039 = vset.pattern.permute.xlu0 0
  %2040 = vperm.xlu0 %2039, %v1913
  %v2041 = vpop.permute.xlu0 %2040
  %2044 = vset.pattern.permute.xlu0 0
  %2045 = vperm.xlu0 %2044, %v1914
  %v2046 = vpop.permute.xlu0 %2045
  %2049 = vset.pattern.permute.xlu0 0
  %2050 = vperm.xlu0 %2049, %v1915
  %v2051 = vpop.permute.xlu0 %2050
  %2054 = vset.pattern.permute.xlu0 0
  %2055 = vperm.xlu0 %2054, %v1916
  %v2056 = vpop.permute.xlu0 %2055
  %2059 = vset.pattern.permute.xlu0 0
  %2060 = vperm.xlu0 %2059, %v1917
  %v2061 = vpop.permute.xlu0 %2060
  %2064 = vset.pattern.permute.xlu0 0
  %2065 = vperm.xlu0 %2064, %v1918
  %v2066 = vpop.permute.xlu0 %2065
  %2069 = vset.pattern.permute.xlu0 0
  %2070 = vperm.xlu0 %2069, %v1919
  %v2071 = vpop.permute.xlu0 %2070
  %2074 = vset.pattern.permute.xlu0 0
  %2075 = vperm.xlu0 %2074, %v1920
  %v2076 = vpop.permute.xlu0 %2075
  %v2078 = vmul.f32 %v2022, %v2041
  %v2079 = vmul.f32 %v2023, %v2041
  %v2080 = vmul.f32 %v2024, %v2046
  %v2081 = vmul.f32 %v2025, %v2046
  %v2082 = vmul.f32 %v2026, %v2051
  %v2083 = vmul.f32 %v2027, %v2051
  %v2084 = vmul.f32 %v2028, %v2056
  %v2085 = vmul.f32 %v2029, %v2056
  %v2086 = vmul.f32 %v2030, %v2061
  %v2087 = vmul.f32 %v2031, %v2061
  %v2088 = vmul.f32 %v2032, %v2066
  %v2089 = vmul.f32 %v2033, %v2066
  %v2090 = vmul.f32 %v2034, %v2071
  %v2091 = vmul.f32 %v2035, %v2071
  %v2092 = vmul.f32 %v2036, %v2076
  %v2093 = vmul.f32 %v2037, %v2076
  %2095 = vset.pattern.permute.xlu0 0
  %2096 = vperm.xlu0 %2095, %v1922
  %v2097 = vpop.permute.xlu0 %2096
  %2100 = vset.pattern.permute.xlu0 0
  %2101 = vperm.xlu0 %2100, %v1923
  %v2102 = vpop.permute.xlu0 %2101
  %2105 = vset.pattern.permute.xlu0 0
  %2106 = vperm.xlu0 %2105, %v1924
  %v2107 = vpop.permute.xlu0 %2106
  %2110 = vset.pattern.permute.xlu0 0
  %2111 = vperm.xlu0 %2110, %v1925
  %v2112 = vpop.permute.xlu0 %2111
  %2115 = vset.pattern.permute.xlu0 0
  %2116 = vperm.xlu0 %2115, %v1926
  %v2117 = vpop.permute.xlu0 %2116
  %2120 = vset.pattern.permute.xlu0 0
  %2121 = vperm.xlu0 %2120, %v1927
  %v2122 = vpop.permute.xlu0 %2121
  %2125 = vset.pattern.permute.xlu0 0
  %2126 = vperm.xlu0 %2125, %v1928
  %v2127 = vpop.permute.xlu0 %2126
  %2130 = vset.pattern.permute.xlu0 0
  %2131 = vperm.xlu0 %2130, %v1929
  %v2132 = vpop.permute.xlu0 %2131
  %v2134 = vadd.f32 %v2078, %v2097
  %v2135 = vadd.f32 %v2079, %v2097
  %v2136 = vadd.f32 %v2080, %v2102
  %v2137 = vadd.f32 %v2081, %v2102
  %v2138 = vadd.f32 %v2082, %v2107
  %v2139 = vadd.f32 %v2083, %v2107
  %v2140 = vadd.f32 %v2084, %v2112
  %v2141 = vadd.f32 %v2085, %v2112
  %v2142 = vadd.f32 %v2086, %v2117
  %v2143 = vadd.f32 %v2087, %v2117
  %v2144 = vadd.f32 %v2088, %v2122
  %v2145 = vadd.f32 %v2089, %v2122
  %v2146 = vadd.f32 %v2090, %v2127
  %v2147 = vadd.f32 %v2091, %v2127
  %v2148 = vadd.f32 %v2092, %v2132
  %v2149 = vadd.f32 %v2093, %v2132
  %v2150 = vmul.f32 %v2134, 0.5
  %v2151 = vmul.f32 %v2135, 0.5
  %v2152 = vmul.f32 %v2136, 0.5
  %v2153 = vmul.f32 %v2137, 0.5
  %v2154 = vmul.f32 %v2138, 0.5
  %v2155 = vmul.f32 %v2139, 0.5
  %v2156 = vmul.f32 %v2140, 0.5
  %v2157 = vmul.f32 %v2141, 0.5
  %v2158 = vmul.f32 %v2142, 0.5
  %v2159 = vmul.f32 %v2143, 0.5
  %v2160 = vmul.f32 %v2144, 0.5
  %v2161 = vmul.f32 %v2145, 0.5
  %v2162 = vmul.f32 %v2146, 0.5
  %v2163 = vmul.f32 %v2147, 0.5
  %v2164 = vmul.f32 %v2148, 0.5
  %v2165 = vmul.f32 %v2149, 0.5
  %v2166 = vmul.f32 %v2134, %v2134
  %v2167 = vmul.f32 %v2135, %v2135
  %v2168 = vmul.f32 %v2136, %v2136
  %v2169 = vmul.f32 %v2137, %v2137
  %v2170 = vmul.f32 %v2138, %v2138
  %v2171 = vmul.f32 %v2139, %v2139
  %v2172 = vmul.f32 %v2140, %v2140
  %v2173 = vmul.f32 %v2141, %v2141
  %v2174 = vmul.f32 %v2142, %v2142
  %v2175 = vmul.f32 %v2143, %v2143
  %v2176 = vmul.f32 %v2144, %v2144
  %v2177 = vmul.f32 %v2145, %v2145
  %v2178 = vmul.f32 %v2146, %v2146
  %v2179 = vmul.f32 %v2147, %v2147
  %v2180 = vmul.f32 %v2148, %v2148
  %v2181 = vmul.f32 %v2149, %v2149
  %v2182 = vmul.f32 %v2166, %v2134
  %v2183 = vmul.f32 %v2167, %v2135
  %v2184 = vmul.f32 %v2168, %v2136
  %v2185 = vmul.f32 %v2169, %v2137
  %v2186 = vmul.f32 %v2170, %v2138
  %v2187 = vmul.f32 %v2171, %v2139
  %v2188 = vmul.f32 %v2172, %v2140
  %v2189 = vmul.f32 %v2173, %v2141
  %v2190 = vmul.f32 %v2174, %v2142
  %v2191 = vmul.f32 %v2175, %v2143
  %v2192 = vmul.f32 %v2176, %v2144
  %v2193 = vmul.f32 %v2177, %v2145
  %v2194 = vmul.f32 %v2178, %v2146
  %v2195 = vmul.f32 %v2179, %v2147
  %v2196 = vmul.f32 %v2180, %v2148
  %v2197 = vmul.f32 %v2181, %v2149
  %v2198 = vmul.f32 %v2182, 0.044715
  %v2199 = vmul.f32 %v2183, 0.044715
  %v2200 = vmul.f32 %v2184, 0.044715
  %v2201 = vmul.f32 %v2185, 0.044715
  %v2202 = vmul.f32 %v2186, 0.044715
  %v2203 = vmul.f32 %v2187, 0.044715
  %v2204 = vmul.f32 %v2188, 0.044715
  %v2205 = vmul.f32 %v2189, 0.044715
  %v2206 = vmul.f32 %v2190, 0.044715
  %v2207 = vmul.f32 %v2191, 0.044715
  %v2208 = vmul.f32 %v2192, 0.044715
  %v2209 = vmul.f32 %v2193, 0.044715
  %v2210 = vmul.f32 %v2194, 0.044715
  %v2211 = vmul.f32 %v2195, 0.044715
  %v2212 = vmul.f32 %v2196, 0.044715
  %v2213 = vmul.f32 %v2197, 0.044715
  %v2214 = vadd.f32 %v2134, %v2198
  %v2215 = vadd.f32 %v2135, %v2199
  %v2216 = vadd.f32 %v2136, %v2200
  %v2217 = vadd.f32 %v2137, %v2201
  %v2218 = vadd.f32 %v2138, %v2202
  %v2219 = vadd.f32 %v2139, %v2203
  %v2220 = vadd.f32 %v2140, %v2204
  %v2221 = vadd.f32 %v2141, %v2205
  %v2222 = vadd.f32 %v2142, %v2206
  %v2223 = vadd.f32 %v2143, %v2207
  %v2224 = vadd.f32 %v2144, %v2208
  %v2225 = vadd.f32 %v2145, %v2209
  %v2226 = vadd.f32 %v2146, %v2210
  %v2227 = vadd.f32 %v2147, %v2211
  %v2228 = vadd.f32 %v2148, %v2212
  %v2229 = vadd.f32 %v2149, %v2213
  %v2230 = vmul.f32 %v2214, 0.7978846
  %v2231 = vmul.f32 %v2215, 0.7978846
  %v2232 = vmul.f32 %v2216, 0.7978846
  %v2233 = vmul.f32 %v2217, 0.7978846
  %v2234 = vmul.f32 %v2218, 0.7978846
  %v2235 = vmul.f32 %v2219, 0.7978846
  %v2236 = vmul.f32 %v2220, 0.7978846
  %v2237 = vmul.f32 %v2221, 0.7978846
  %v2238 = vmul.f32 %v2222, 0.7978846
  %v2239 = vmul.f32 %v2223, 0.7978846
  %v2240 = vmul.f32 %v2224, 0.7978846
  %v2241 = vmul.f32 %v2225, 0.7978846
  %v2242 = vmul.f32 %v2226, 0.7978846
  %v2243 = vmul.f32 %v2227, 0.7978846
  %v2244 = vmul.f32 %v2228, 0.7978846
  %v2245 = vmul.f32 %v2229, 0.7978846
  %v2246 = vtanh.pop %v2230
  %v2247 = vtanh.pop %v2231
  %v2248 = vtanh.pop %v2232
  %v2249 = vtanh.pop %v2233
  %v2250 = vtanh.pop %v2234
  %v2251 = vtanh.pop %v2235
  %v2252 = vtanh.pop %v2236
  %v2253 = vtanh.pop %v2237
  %v2254 = vtanh.pop %v2238
  %v2255 = vtanh.pop %v2239
  %v2256 = vtanh.pop %v2240
  %v2257 = vtanh.pop %v2241
  %v2258 = vtanh.pop %v2242
  %v2259 = vtanh.pop %v2243
  %v2260 = vtanh.pop %v2244
  %v2261 = vtanh.pop %v2245
  %v2262 = vadd.f32 %v2246, 1.0
  %v2263 = vadd.f32 %v2247, 1.0
  %v2264 = vadd.f32 %v2248, 1.0
  %v2265 = vadd.f32 %v2249, 1.0
  %v2266 = vadd.f32 %v2250, 1.0
  %v2267 = vadd.f32 %v2251, 1.0
  %v2268 = vadd.f32 %v2252, 1.0
  %v2269 = vadd.f32 %v2253, 1.0
  %v2270 = vadd.f32 %v2254, 1.0
  %v2271 = vadd.f32 %v2255, 1.0
  %v2272 = vadd.f32 %v2256, 1.0
  %v2273 = vadd.f32 %v2257, 1.0
  %v2274 = vadd.f32 %v2258, 1.0
  %v2275 = vadd.f32 %v2259, 1.0
  %v2276 = vadd.f32 %v2260, 1.0
  %v2277 = vadd.f32 %v2261, 1.0
  %v2278 = vmul.f32 %v2150, %v2262
  %v2279 = vmul.f32 %v2151, %v2263
  %v2280 = vmul.f32 %v2152, %v2264
  %v2281 = vmul.f32 %v2153, %v2265
  %v2282 = vmul.f32 %v2154, %v2266
  %v2283 = vmul.f32 %v2155, %v2267
  %v2284 = vmul.f32 %v2156, %v2268
  %v2285 = vmul.f32 %v2157, %v2269
  %v2286 = vmul.f32 %v2158, %v2270
  %v2287 = vmul.f32 %v2159, %v2271
  %v2288 = vmul.f32 %v2160, %v2272
  %v2289 = vmul.f32 %v2161, %v2273
  %v2290 = vmul.f32 %v2162, %v2274
  %v2291 = vmul.f32 %v2163, %v2275
  %v2292 = vmul.f32 %v2164, %v2276
  %v2293 = vmul.f32 %v2165, %v2277
  %v2294 = vadd.f32 %v1725, %v2278
  %v2295 = vadd.f32 %v1726, %v2279
  %v2296 = vadd.f32 %v1727, %v2280
  %v2297 = vadd.f32 %v1728, %v2281
  %v2298 = vadd.f32 %v1729, %v2282
  %v2299 = vadd.f32 %v1730, %v2283
  %v2300 = vadd.f32 %v1731, %v2284
  %v2301 = vadd.f32 %v1732, %v2285
  %v2302 = vadd.f32 %v1733, %v2286
  %v2303 = vadd.f32 %v1734, %v2287
  %v2304 = vadd.f32 %v1735, %v2288
  %v2305 = vadd.f32 %v1736, %v2289
  %v2306 = vadd.f32 %v1737, %v2290
  %v2307 = vadd.f32 %v1738, %v2291
  %v2308 = vadd.f32 %v1739, %v2292
  %v2309 = vadd.f32 %v1740, %v2293
  %v2310 = vld [vmem:[%s9] sm:$0xf]
  %v2311 = vld [vmem:[%s9 + $0x4] sm:$0xf]
  %v2312 = vld [vmem:[%s9 + $0x8] sm:$0xf]
  %v2313 = vld [vmem:[%s9 + $0xc] sm:$0xf]
  %v2314 = vpack.c.bf16 %v2296, %v2294
  %v2315 = vpack.c.bf16 %v2297, %v2295
  %v2316 = vpack.c.bf16 %v2300, %v2298
  %v2317 = vpack.c.bf16 %v2301, %v2299
  %v2318 = vpack.c.bf16 %v2304, %v2302
  %v2319 = vpack.c.bf16 %v2305, %v2303
  %v2320 = vpack.c.bf16 %v2308, %v2306
  %v2321 = vpack.c.bf16 %v2309, %v2307
  %v2322 = vld [vmem:[%s10] sm:$0xff]
  %v2323 = vld [vmem:[%s10 + $0x8] sm:$0xff]
  %v2324 = vld [vmem:[%s10 + $0x10] sm:$0xff]
  %v2325 = vld [vmem:[%s10 + $0x18] sm:$0xff]
  %2327 = vset.pattern.permute.xlu0 0
  %2328 = vperm.xlu0 %2327, %v2322
  %v2329 = vpop.permute.xlu0 %2328
  %2332 = vset.pattern.permute.xlu0 0
  %2333 = vperm.xlu0 %2332, %v2323
  %v2334 = vpop.permute.xlu0 %2333
  %2337 = vset.pattern.permute.xlu0 0
  %2338 = vperm.xlu0 %2337, %v2324
  %v2339 = vpop.permute.xlu0 %2338
  %2342 = vset.pattern.permute.xlu0 0
  %2343 = vperm.xlu0 %2342, %v2325
  %v2344 = vpop.permute.xlu0 %2343
  %v2350 = vunpack.c.l.b16 %v2310
  %v2351 = vunpack.c.l.b16 %v2311
  %v2352 = vunpack.c.l.b16 %v2312
  %v2353 = vunpack.c.l.b16 %v2313
  %v2354 = vpack.c.b16 %v2351, %v2350
  %v2355 = vpack.c.b16 %v2353, %v2352
  %v2357 = vsel %vm690, %v2354, 0
  %v2360 = vsel %vm690, %v2355, 0
  %2362 = vmatprep.subr.bf16.mxu0 0
  %2363 = vmatpush1.bf16.msra.mxu0 0
  %2364 = vmatprep.subr.bf16.mxu0 0
  %2365 = vmatpush1.bf16.msra.mxu0 0
  %2366 = vmatprep.subr.bf16.mxu0 0
  %2367 = vmatpush1.bf16.msra.mxu0 0
  %2368 = vmatprep.subr.bf16.mxu0 0
  %2369 = vmatpush1.bf16.msra.mxu0 0
  %2370 = vmatprep.subr.bf16.mxu0 %v2321
  %2371 = vmatpush1.bf16.msra.mxu0 %v2320
  %2372 = vmatprep.subr.bf16.mxu0 %v2319
  %2373 = vmatpush1.bf16.msra.mxu0 %v2318
  %2374 = vmatprep.subr.bf16.mxu0 %v2317
  %2375 = vmatpush1.bf16.msra.mxu0 %v2316
  %2376 = vmatprep.subr.bf16.mxu0 %v2315
  %2377 = vmatpush1.bf16.msra.mxu0 %v2314
  %2378 = vmatprep.subr.bf16.mxu0 0
  %2379 = vmatpush2.bf16.msra.mxu0 0
  %2380 = vmatprep.subr.bf16.mxu0 0
  %2381 = vmatpush2.bf16.msra.mxu0 0
  %2382 = vmatprep.subr.bf16.mxu0 0
  %2383 = vmatpush2.bf16.msra.mxu0 0
  %2384 = vmatprep.subr.bf16.mxu0 0
  %2385 = vmatpush2.bf16.msra.mxu0 0
  %2386 = vmatprep.subr.bf16.mxu0 0
  %2387 = vmatpush2.bf16.msra.mxu0 0
  %2388 = vmatprep.subr.bf16.mxu0 0
  %2389 = vmatpush2.bf16.msra.mxu0 0
  %2390 = vmatprep.subr.bf16.mxu0 0
  %2391 = vmatpush2.bf16.msra.mxu0 0
  %2392 = vmatprep.subr.bf16.mxu0 0
  %2393 = vmatpush2.bf16.msra.mxu0 0
  %2394 = vmatprep.mubr.bf16.mxu0 0
  %2395 = vmatmul.mubr.bf16.gmra.mxu0 %v2357
  %v2396 = vpop.f32.mrf.mxu0
  %v2397 = vadd.f32 %v2329, %v2396
  %v2398 = vpop.f32.mrf.mxu0
  %v2399 = vadd.f32 %v2329, %v2398
  %v2400 = vpop.f32.mrf.mxu0
  %v2401 = vadd.f32 %v2334, %v2400
  %v2402 = vpop.f32.mrf.mxu0
  %v2403 = vadd.f32 %v2334, %v2402
  %2404 = vmatprep.mubr.bf16.mxu0 0
  %2405 = vmatmul.mubr.bf16.gmra.mxu0 %v2360
  %v2406 = vpop.f32.mrf.mxu0
  %v2407 = vadd.f32 %v2339, %v2406
  %v2408 = vpop.f32.mrf.mxu0
  %v2409 = vadd.f32 %v2339, %v2408
  %v2410 = vpop.f32.mrf.mxu0
  %v2411 = vadd.f32 %v2344, %v2410
  %v2412 = vpop.f32.mrf.mxu0
  %v2413 = vadd.f32 %v2344, %v2412
  %2414 = vdwg.mxu0
  %2415 = vst [vmem:[%s11] sm:$0xff] %v2397
  %2416 = vst [vmem:[%s11 + $0x8] sm:$0xff] %v2399
  %2417 = vst [vmem:[%s11 + $0x10] sm:$0xff] %v2401
  %2418 = vst [vmem:[%s11 + $0x18] sm:$0xff] %v2403
  %2419 = vst [vmem:[%s11 + $0x20] sm:$0xff] %v2407
  %2420 = vst [vmem:[%s11 + $0x28] sm:$0xff] %v2409
  %2421 = vst [vmem:[%s11 + $0x30] sm:$0xff] %v2411
  %2422 = vst [vmem:[%s11 + $0x38] sm:$0xff] %v2413
  // Predicated region
  $region46: #{resmlp.1} parent=0 // pred_check
    _
  $region47: #{resmlp.1} parent=0 // pred_check_branch
    %2424 = sbr.rel (0) target = $region49
  $region48: #{resmlp.1} parent=0 // pred_region
    _
  $region49: #{resmlp.1} parent=0 // pred_fallthru
    _
  // Predicated region
  $region50: #{resmlp.1} parent=0 // pred_check
    _
  $region51: #{resmlp.1} parent=0 // pred_check_branch
    %2426 = sbr.rel (0) target = $region53
  $region52: #{resmlp.1} parent=0 // pred_region
    _
  $region53: #{resmlp.1} parent=0 // pred_fallthru
    _

</llo_original>
